<compile_context>
chip_gen: v5e
topology: v5e:2x2
jax: 0.10.0
libtpu: 0.0.40
codegen_flags: <defaults>
</compile_context>

<pallas_src>
import functools

import jax
import jax.numpy as jnp
from jax.experimental import pallas as pl
from jax.experimental.pallas import tpu as pltpu

EDGE_WIDTH = 32
NUM_HEADS = 4
LN_EPS = 1e-5


# ----------------------------- plain-JAX glue helpers -----------------------------

def layer_norm(x, w, b, eps=LN_EPS):
    mu = jnp.mean(x, axis=-1, keepdims=True)
    var = jnp.mean(jnp.square(x - mu), axis=-1, keepdims=True)
    return (x - mu) * jax.lax.rsqrt(var + eps) * w + b


def linear(x, w, b, precision=None):
    # w: [out, in] (PyTorch nn.Linear convention); y = x @ w.T + b
    return jnp.dot(x, w.T, precision=precision) + b


# ----------------------------- Pallas kernel -----------------------------

def _tri_attn_kernel(qht_ref, k_ref, vt_ref, bias_ref, gate_ref, o_ref, *, tj):
    """One grid step = one batch b and Tj edge-columns j (all rows i, all heads, both paths)."""
    out_dtype = o_ref.dtype

    def attend(q, k, vt, bias, gate):
        # q:[d, H*Ni] bf16   k:[Nk, d] bf16   vt:[d, Nk] bf16   bias/gate:[Nk, H*Ni]
        s = jax.lax.dot_general(k, q, (((1,), (0,)), ((), ())),
                                preferred_element_type=jnp.float32)        # [Nk, H*Ni] f32
        s = s + bias                                                       # (E + mask)
        s = s - jnp.max(s, axis=0, keepdims=True)                          # sublane (k) reduce
        p = jnp.exp(s)
        l = jnp.sum(p, axis=0, keepdims=True)                              # [1, H*Ni]
        a = (p * gate).astype(vt.dtype)                                    # un-normalized * gate
        o = jax.lax.dot_general(vt, a, (((1,), (0,)), ((), ())),
                                preferred_element_type=jnp.float32)        # [d, H*Ni] f32
        # deferred, exact normalization on the small [d, H*Ni] result
        return o * (1.0 / l)

    for t in range(tj):  # static unroll over the Tj j-columns of this grid step
        o_in = attend(qht_ref[0, t, 0], k_ref[0, t, 0], vt_ref[0, t, 0],
                      bias_ref[0, 0], gate_ref[0, 0])
        o_out = attend(qht_ref[0, t, 1], k_ref[0, t, 1], vt_ref[0, t, 1],
                       bias_ref[0, 1], gate_ref[0, 1])
        # single lane-dense [2d, H*Ni] store per column (sublane concat of full f32 rows)
        o_ref[0, t] = jnp.concatenate([o_in, o_out], axis=0).astype(out_dtype)


# ----------------------------- module forward (Pallas-backed) -----------------------------

def _resident_spec(shape, index_map, single_buffer):
    # j-invariant resident blocks: single-buffer them to halve their VMEM once it matters.
    if single_buffer:
        try:
            return pl.BlockSpec(shape, index_map, pipeline_mode=pl.Buffered(1))
        except Exception:
            pass
    return pl.BlockSpec(shape, index_map)


def _round_up(x, m):
    return (x + m - 1) // m * m


def triangle_attention_mq(params, e, mask):
    B, N, _, D = e.shape
    H = NUM_HEADS
    d = D // H
    scale = d ** -0.5

    # --- hardware query (clamps / dtype choices only) ---
    try:
        vmem_cap = int(pltpu.get_tpu_info().vmem_capacity_bytes)
    except Exception:
        vmem_cap = 128 * 1024 * 1024
    # bias/gate are resident; f32 avoids bf16->f32 promotes against the f32 scores/probs on
    # 128 MiB parts (v5e/v6e); on tight-VMEM parts (v7x, 64 MiB) use bf16 to fit larger N.
    res_dtype = jnp.bfloat16 if vmem_cap <= 96 * 1024 * 1024 else jnp.float32

    e_ln = layer_norm(e, params["ln_w"], params["ln_b"])

    # --- projections: ordinary XLA GEMMs; layouts produced directly in the kernel's form ---
    Wq_in_r = (scale * params["Wq_in"]).reshape(d, H, D)   # torch Q channel = dd*H + h
    bq_in_r = (scale * params["bq_in"]).reshape(d, H)
    Wq_out_r = (scale * params["Wq_out"]).reshape(d, H, D)
    bq_out_r = (scale * params["bq_out"]).reshape(d, H)

    # queries transposed, (head, i) merged into the lane axis: [B, Nj, d, H*Ni]
    QHT_in = (jnp.einsum("bijc,dhc->bjdhi", e_ln, Wq_in_r)
              + bq_in_r[None, None, :, :, None]).reshape(B, N, d, H * N)
    QHT_out = (jnp.einsum("bijc,dhc->bjdhi", e_ln, Wq_out_r)
               + bq_out_r[None, None, :, :, None]).reshape(B, N, d, H * N)

    Wk_in, Wv_in = params["Wkv_in"][:d], params["Wkv_in"][d:]
    bk_in, bv_in = params["bkv_in"][:d], params["bkv_in"][d:]
    Wk_out, Wv_out = params["Wkv_out"][:d], params["Wkv_out"][d:]
    bk_out, bv_out = params["bkv_out"][:d], params["bkv_out"][d:]

    # keys natural [B, Nj, Nk, d]; values transposed [B, Nj, d, Nk]
    K_in = jnp.einsum("bjkc,ec->bjke", e_ln, Wk_in) + bk_in
    VT_in = jnp.einsum("bjkc,ec->bjek", e_ln, Wv_in) + bv_in[None, None, :, None]
    K_out = jnp.einsum("bkjc,ec->bjke", e_ln, Wk_out) + bk_out
    VT_out = jnp.einsum("bkjc,ec->bjek", e_ln, Wv_out) + bv_out[None, None, :, None]

    # j-invariant (E+mask) biases and sigmoid(G+mask) gates, layout [B, path, Nk, H*Ni]
    EG_in = jnp.einsum("bikc,gc->bikg", e_ln, params["Weg_in"]) + params["beg_in"]
    EG_out = jnp.einsum("bkic,gc->bkig", e_ln, params["Weg_out"]) + params["beg_out"]
    bias_in = jnp.transpose(EG_in[..., :H] + mask, (0, 2, 3, 1)).reshape(B, N, H * N)
    gate_in = jax.nn.sigmoid(jnp.transpose(EG_in[..., H:] + mask, (0, 2, 3, 1))
                             ).reshape(B, N, H * N)
    bias_out = jnp.transpose(EG_out[..., :H] + mask, (0, 1, 3, 2)).reshape(B, N, H * N)
    gate_out = jax.nn.sigmoid(jnp.transpose(EG_out[..., H:] + mask, (0, 1, 3, 2))
                              ).reshape(B, N, H * N)

    bf16 = lambda x: x.astype(jnp.bfloat16)
    qht = bf16(jnp.stack([QHT_in, QHT_out], axis=2))                  # [B, Nj, 2, d, H*Ni]
    kk = bf16(jnp.stack([K_in, K_out], axis=2))                       # [B, Nj, 2, Nk, d]
    vt = bf16(jnp.stack([VT_in, VT_out], axis=2))                     # [B, Nj, 2, d, Nk]
    bias = jnp.stack([bias_in, bias_out], axis=1).astype(res_dtype)   # [B, 2, Nk, H*Ni]
    gate = jnp.stack([gate_in, gate_out], axis=1).astype(res_dtype)   # [B, 2, Nk, H*Ni]

    # --- grid / specs ---
    tj = next(t for t in (16, 8, 4, 2, 1) if N % t == 0)   # Tj j-columns per grid step
    HN = H * N

    spec_qht = pl.BlockSpec((1, tj, 2, d, HN), lambda b, j: (b, j, 0, 0, 0))
    spec_k = pl.BlockSpec((1, tj, 2, N, d), lambda b, j: (b, j, 0, 0, 0))
    spec_vt = pl.BlockSpec((1, tj, 2, d, N), lambda b, j: (b, j, 0, 0, 0))
    spec_o = pl.BlockSpec((1, tj, 2 * d, HN), lambda b, j: (b, j, 0, 0))
    spec_res = _resident_spec((1, 2, N, HN), lambda b, j: (b, 0, 0, 0),
                              single_buffer=(N >= 128))

    # --- VMEM budget (padded-tile estimate) & cost hint ---
    itemsize_res = jnp.dtype(res_dtype).itemsize
    qht_b = tj * 2 * _round_up(d, 16) * _round_up(HN, 128) * 2
    k_b = tj * 2 * _round_up(N, 16) * _round_up(d, 128) * 2
    vt_b = tj * 2 * _round_up(d, 16) * _round_up(N, 128) * 2
    o_b = tj * _round_up(2 * d, 16) * _round_up(HN, 128) * 2
    res_b = 2 * _round_up(N, 8) * _round_up(HN, 128) * itemsize_res
    res_bufs = 1 if N >= 128 else 2
    temps = 4 * N * _round_up(HN, 128) * 4 + (4 << 20)      # live f32 score/exp tiles + slack
    need = 2 * (qht_b + k_b + vt_b + o_b) + res_bufs * 2 * res_b + temps
    # ~78% of physical VMEM: ~50 MiB on v7x (64 MiB), ~100 MiB on v5e/v6e (128 MiB)
    cap = int(vmem_cap * 0.78)
    vmem_limit = int(min(max(need, 32 * 1024 * 1024), cap))

    flops = 8 * B * H * d * N ** 3                 # QK^T + AV, both paths, all heads
    transcendentals = 2 * B * H * N ** 3           # softmax exp
    bytes_accessed = (qht.size * 2 + kk.size * 2 + vt.size * 2
                      + (bias.size + gate.size) * itemsize_res
                      + B * N * 2 * d * HN * 2)

    va = pl.pallas_call(
        functools.partial(_tri_attn_kernel, tj=tj),
        grid=(B, N // tj),                                   # (batch, j-block)
        in_specs=[spec_qht, spec_k, spec_vt, spec_res, spec_res],
        out_specs=spec_o,
        out_shape=jax.ShapeDtypeStruct((B, N, 2 * d, HN), jnp.bfloat16),
        compiler_params=pltpu.CompilerParams(
            dimension_semantics=("parallel", "parallel"),
            vmem_limit_bytes=vmem_limit),
        cost_estimate=pl.CostEstimate(flops=int(flops),
                                      transcendentals=int(transcendentals),
                                      bytes_accessed=int(bytes_accessed)),
    )(qht, kk, vt, bias, gate)

    # Output projection consumes the kernel's [b, j, p*d+dd, h*Ni+i] slab directly; the i<->j
    # swap and the torch channel order (dd*2H + p*H + h) are folded into this GEMM.
    Wo_r = params["Wo"].reshape(D, d, 2, H).transpose(0, 2, 1, 3)   # [o, p, dd, h]
    va6 = va.reshape(B, N, 2, d, H, N)                               # [b, j, p, dd, h, i]
    return jnp.einsum("bjpdhi,opdh->bijo", va6, Wo_r) + params["bo"]


# ----------------------------- pure-JAX reference (mirrors torch forward) -----------------------------

def reference_forward(params, e, mask):
    B, N, _, D = e.shape
    H = NUM_HEADS
    d = D // H
    scale = d ** -0.5
    hi = jax.lax.Precision.HIGHEST

    e_ln = layer_norm(e, params["ln_w"], params["ln_b"])

    Q_in = linear(e_ln, params["Wq_in"], params["bq_in"], hi).reshape(B, N, N, d, H) * scale
    KV_in = linear(e_ln, params["Wkv_in"], params["bkv_in"], hi)
    K_in, V_in = KV_in[..., :d], KV_in[..., d:]
    EG_in = linear(e_ln, params["Weg_in"], params["beg_in"], hi)
    E_in, G_in = EG_in[..., :H], EG_in[..., H:]

    H_in = jnp.einsum('bijdh,bjkd->bijkh', Q_in, K_in, precision=hi) + E_in[:, :, None]
    mask_in = mask[:, :, None]
    gates_in = jax.nn.sigmoid(G_in[:, :, None] + mask_in)
    A_in = jax.nn.softmax(H_in + mask_in, axis=3) * gates_in
    Va_in = jnp.einsum('bijkh,bjkd->bijdh', A_in, V_in, precision=hi)

    Q_out = linear(e_ln, params["Wq_out"], params["bq_out"], hi).reshape(B, N, N, d, H) * scale
    KV_out = linear(e_ln, params["Wkv_out"], params["bkv_out"], hi)
    K_out, V_out = KV_out[..., :d], KV_out[..., d:]
    EG_out = linear(e_ln, params["Weg_out"], params["beg_out"], hi)
    E_out, G_out = EG_out[..., :H], EG_out[..., H:]

    H_out = jnp.einsum('bijdh,bkjd->bkijh', Q_out, K_out, precision=hi) + E_out[:, :, :, None]
    mask_out = mask[:, :, :, None]
    gates_out = jax.nn.sigmoid(G_out[:, :, :, None] + mask_out)
    A_out = jax.nn.softmax(H_out + mask_out, axis=1) * gates_out
    Va_out = jnp.einsum('bkijh,bkjd->bijdh', A_out, V_out, precision=hi)

    Va = jnp.concatenate([Va_in, Va_out], axis=-1).reshape(B, N, N, 2 * D)
    return linear(Va, params["Wo"], params["bo"], hi)


# ----------------------------- deterministic parameter init -----------------------------

def _init_linear(key, out_f, in_f):
    kw, kb = jax.random.split(key)
    bound = 1.0 / (in_f ** 0.5)
    w = jax.random.uniform(kw, (out_f, in_f), jnp.float32, -bound, bound)
    b = jax.random.uniform(kb, (out_f,), jnp.float32, -bound, bound)
    return w, b


def init_params(key, D, H):
    d = D // H
    ks = jax.random.split(key, 7)
    p = {"ln_w": jnp.ones((D,), jnp.float32), "ln_b": jnp.zeros((D,), jnp.float32)}
    p["Wq_in"], p["bq_in"] = _init_linear(ks[0], D, D)
    p["Wkv_in"], p["bkv_in"] = _init_linear(ks[1], 2 * d, D)
    p["Weg_in"], p["beg_in"] = _init_linear(ks[2], 2 * H, D)
    p["Wq_out"], p["bq_out"] = _init_linear(ks[3], D, D)
    p["Wkv_out"], p["bkv_out"] = _init_linear(ks[4], 2 * d, D)
    p["Weg_out"], p["beg_out"] = _init_linear(ks[5], 2 * H, D)
    p["Wo"], p["bo"] = _init_linear(ks[6], D, 2 * D)
    return p


if __name__ == "__main__":
    # TODO(synk): source_dropout (training-only Bernoulli source masking) is not implemented;
    # this kernel reproduces eval/inference semantics (dropout inactive), as in module.eval().
    B, N, D, H = 2, 8, EDGE_WIDTH, NUM_HEADS
    key = jax.random.PRNGKey(0)
    kp, ke, km = jax.random.split(key, 3)
    params = init_params(kp, D, H)
    e = jax.random.normal(ke, (B, N, N, D), dtype=jnp.float32)
    keep = jax.random.bernoulli(km, 0.85, (B, N, N, H))
    mask = jnp.where(keep, 0.0, -1e9).astype(jnp.float32)

    out = jax.jit(triangle_attention_mq)(params, e, mask)
    out = jax.block_until_ready(out)
    assert out.shape == (B, N, N, D)

    ref = reference_forward(params, e, mask)
    max_err = float(jnp.max(jnp.abs(out - ref)))
    # bf16 Q/K/V/A + bf16 kernel output vs f32 HIGHEST-precision reference
    assert max_err < 5e-2, f"mismatch vs reference: max abs err = {max_err}"
    print("KERNEL_OK")
</pallas_src>

<mosaic_0001>
module attributes {stable_mosaic.version = 11 : i64} {
  func.func @_tri_attn_kernel(%arg0: i32, %arg1: i32, %arg2: memref<1x8x2x8x32xbf16, #tpu.memory_space<vmem>>, %arg3: memref<1x8x2x8x8xbf16, #tpu.memory_space<vmem>>, %arg4: memref<1x8x2x8x8xbf16, #tpu.memory_space<vmem>>, %arg5: memref<1x2x8x32xf32, #tpu.memory_space<vmem>>, %arg6: memref<1x2x8x32xf32, #tpu.memory_space<vmem>>, %arg7: memref<1x8x16x32xbf16, #tpu.memory_space<vmem>>) attributes {dimension_semantics = [#tpu.dimension_semantics<parallel>, #tpu.dimension_semantics<parallel>], iteration_bounds = array<i64: 2, 1>, scalar_prefetch = 0 : i64, scratch_operands = 0 : i64, tpu.core_type = #tpu.core_type<tc>, window_params = [{transform_indices = @transform_0, window_bounds = array<i64: 1, 8, 2, 8, 32>}, {transform_indices = @transform_1, window_bounds = array<i64: 1, 8, 2, 8, 8>}, {transform_indices = @transform_2, window_bounds = array<i64: 1, 8, 2, 8, 8>}, {transform_indices = @transform_3, window_bounds = array<i64: 1, 2, 8, 32>}, {transform_indices = @transform_4, window_bounds = array<i64: 1, 2, 8, 32>}, {transform_indices = @transform_5, window_bounds = array<i64: 1, 8, 16, 32>}]} {
    %c0 = arith.constant 0 : index
    %c0_0 = arith.constant 0 : index
    %c0_1 = arith.constant 0 : index
    %c0_2 = arith.constant 0 : index
    %c0_3 = arith.constant 0 : index
    %0 = vector.load %arg2[%c0, %c0_0, %c0_1, %c0_2, %c0_3] : memref<1x8x2x8x32xbf16, #tpu.memory_space<vmem>>, vector<1x1x1x8x32xbf16>
    %1 = vector.shape_cast %0 : vector<1x1x1x8x32xbf16> to vector<8x32xbf16>
    %c0_4 = arith.constant 0 : index
    %c0_5 = arith.constant 0 : index
    %c0_6 = arith.constant 0 : index
    %c0_7 = arith.constant 0 : index
    %c0_8 = arith.constant 0 : index
    %2 = vector.load %arg3[%c0_4, %c0_5, %c0_6, %c0_7, %c0_8] : memref<1x8x2x8x8xbf16, #tpu.memory_space<vmem>>, vector<1x1x1x8x8xbf16>
    %3 = vector.shape_cast %2 : vector<1x1x1x8x8xbf16> to vector<8x8xbf16>
    %c0_9 = arith.constant 0 : index
    %c0_10 = arith.constant 0 : index
    %c0_11 = arith.constant 0 : index
    %c0_12 = arith.constant 0 : index
    %c0_13 = arith.constant 0 : index
    %4 = vector.load %arg4[%c0_9, %c0_10, %c0_11, %c0_12, %c0_13] : memref<1x8x2x8x8xbf16, #tpu.memory_space<vmem>>, vector<1x1x1x8x8xbf16>
    %5 = vector.shape_cast %4 : vector<1x1x1x8x8xbf16> to vector<8x8xbf16>
    %c0_14 = arith.constant 0 : index
    %c0_15 = arith.constant 0 : index
    %c0_16 = arith.constant 0 : index
    %c0_17 = arith.constant 0 : index
    %6 = vector.load %arg5[%c0_14, %c0_15, %c0_16, %c0_17] : memref<1x2x8x32xf32, #tpu.memory_space<vmem>>, vector<1x1x8x32xf32>
    %7 = vector.shape_cast %6 : vector<1x1x8x32xf32> to vector<8x32xf32>
    %c0_18 = arith.constant 0 : index
    %c0_19 = arith.constant 0 : index
    %c0_20 = arith.constant 0 : index
    %c0_21 = arith.constant 0 : index
    %8 = vector.load %arg6[%c0_18, %c0_19, %c0_20, %c0_21] : memref<1x2x8x32xf32, #tpu.memory_space<vmem>>, vector<1x1x8x32xf32>
    %9 = vector.shape_cast %8 : vector<1x1x8x32xf32> to vector<8x32xf32>
    %cst = arith.constant dense<0.000000e+00> : vector<8x32xf32>
    %10 = tpu.matmul %3, %1, %cst {dimension_numbers = #tpu.dot_dimension_numbers<[1], [0], [0], [1], [0, 0, 1, 1], [], []>} : vector<8x8xbf16>, vector<8x32xbf16>, vector<8x32xf32> -> vector<8x32xf32>
    %11 = arith.addf %10, %7 : vector<8x32xf32>
    %cst_22 = arith.constant dense<0xFF800000> : vector<32xf32>
    %12 = vector.multi_reduction <maximumf>, %11, %cst_22 [0] : vector<8x32xf32> to vector<32xf32>
    %13 = vector.shape_cast %12 : vector<32xf32> to vector<1x32xf32>
    %14 = vector.broadcast %13 : vector<1x32xf32> to vector<8x32xf32>
    %15 = arith.subf %11, %14 : vector<8x32xf32>
    %16 = math.exp %15 : vector<8x32xf32>
    %cst_23 = arith.constant dense<0.000000e+00> : vector<32xf32>
    %17 = vector.multi_reduction <add>, %16, %cst_23 [0] : vector<8x32xf32> to vector<32xf32>
    %18 = vector.shape_cast %17 : vector<32xf32> to vector<1x32xf32>
    %19 = arith.mulf %16, %9 : vector<8x32xf32>
    %20 = arith.truncf %19 : vector<8x32xf32> to vector<8x32xbf16>
    %cst_24 = arith.constant dense<0.000000e+00> : vector<8x32xf32>
    %21 = tpu.matmul %5, %20, %cst_24 {dimension_numbers = #tpu.dot_dimension_numbers<[1], [0], [0], [1], [0, 0, 1, 1], [], []>} : vector<8x8xbf16>, vector<8x32xbf16>, vector<8x32xf32> -> vector<8x32xf32>
    %cst_25 = arith.constant 1.000000e+00 : f32
    %22 = vector.broadcast %cst_25 : f32 to vector<1x32xf32>
    %23 = arith.divf %22, %18 : vector<1x32xf32>
    %24 = vector.broadcast %23 : vector<1x32xf32> to vector<8x32xf32>
    %25 = arith.mulf %21, %24 : vector<8x32xf32>
    %c0_26 = arith.constant 0 : index
    %c0_27 = arith.constant 0 : index
    %c1 = arith.constant 1 : index
    %c0_28 = arith.constant 0 : index
    %c0_29 = arith.constant 0 : index
    %26 = vector.load %arg2[%c0_26, %c0_27, %c1, %c0_28, %c0_29] : memref<1x8x2x8x32xbf16, #tpu.memory_space<vmem>>, vector<1x1x1x8x32xbf16>
    %27 = vector.shape_cast %26 : vector<1x1x1x8x32xbf16> to vector<8x32xbf16>
    %c0_30 = arith.constant 0 : index
    %c0_31 = arith.constant 0 : index
    %c1_32 = arith.constant 1 : index
    %c0_33 = arith.constant 0 : index
    %c0_34 = arith.constant 0 : index
    %28 = vector.load %arg3[%c0_30, %c0_31, %c1_32, %c0_33, %c0_34] : memref<1x8x2x8x8xbf16, #tpu.memory_space<vmem>>, vector<1x1x1x8x8xbf16>
    %29 = vector.shape_cast %28 : vector<1x1x1x8x8xbf16> to vector<8x8xbf16>
    %c0_35 = arith.constant 0 : index
    %c0_36 = arith.constant 0 : index
    %c1_37 = arith.constant 1 : index
    %c0_38 = arith.constant 0 : index
    %c0_39 = arith.constant 0 : index
    %30 = vector.load %arg4[%c0_35, %c0_36, %c1_37, %c0_38, %c0_39] : memref<1x8x2x8x8xbf16, #tpu.memory_space<vmem>>, vector<1x1x1x8x8xbf16>
    %31 = vector.shape_cast %30 : vector<1x1x1x8x8xbf16> to vector<8x8xbf16>
    %c0_40 = arith.constant 0 : index
    %c1_41 = arith.constant 1 : index
    %c0_42 = arith.constant 0 : index
    %c0_43 = arith.constant 0 : index
    %32 = vector.load %arg5[%c0_40, %c1_41, %c0_42, %c0_43] : memref<1x2x8x32xf32, #tpu.memory_space<vmem>>, vector<1x1x8x32xf32>
    %33 = vector.shape_cast %32 : vector<1x1x8x32xf32> to vector<8x32xf32>
    %c0_44 = arith.constant 0 : index
    %c1_45 = arith.constant 1 : index
    %c0_46 = arith.constant 0 : index
    %c0_47 = arith.constant 0 : index
    %34 = vector.load %arg6[%c0_44, %c1_45, %c0_46, %c0_47] : memref<1x2x8x32xf32, #tpu.memory_space<vmem>>, vector<1x1x8x32xf32>
    %35 = vector.shape_cast %34 : vector<1x1x8x32xf32> to vector<8x32xf32>
    %cst_48 = arith.constant dense<0.000000e+00> : vector<8x32xf32>
    %36 = tpu.matmul %29, %27, %cst_48 {dimension_numbers = #tpu.dot_dimension_numbers<[1], [0], [0], [1], [0, 0, 1, 1], [], []>} : vector<8x8xbf16>, vector<8x32xbf16>, vector<8x32xf32> -> vector<8x32xf32>
    %37 = arith.addf %36, %33 : vector<8x32xf32>
    %cst_49 = arith.constant dense<0xFF800000> : vector<32xf32>
    %38 = vector.multi_reduction <maximumf>, %37, %cst_49 [0] : vector<8x32xf32> to vector<32xf32>
    %39 = vector.shape_cast %38 : vector<32xf32> to vector<1x32xf32>
    %40 = vector.broadcast %39 : vector<1x32xf32> to vector<8x32xf32>
    %41 = arith.subf %37, %40 : vector<8x32xf32>
    %42 = math.exp %41 : vector<8x32xf32>
    %cst_50 = arith.constant dense<0.000000e+00> : vector<32xf32>
    %43 = vector.multi_reduction <add>, %42, %cst_50 [0] : vector<8x32xf32> to vector<32xf32>
    %44 = vector.shape_cast %43 : vector<32xf32> to vector<1x32xf32>
    %45 = arith.mulf %42, %35 : vector<8x32xf32>
    %46 = arith.truncf %45 : vector<8x32xf32> to vector<8x32xbf16>
    %cst_51 = arith.constant dense<0.000000e+00> : vector<8x32xf32>
    %47 = tpu.matmul %31, %46, %cst_51 {dimension_numbers = #tpu.dot_dimension_numbers<[1], [0], [0], [1], [0, 0, 1, 1], [], []>} : vector<8x8xbf16>, vector<8x32xbf16>, vector<8x32xf32> -> vector<8x32xf32>
    %cst_52 = arith.constant 1.000000e+00 : f32
    %48 = vector.broadcast %cst_52 : f32 to vector<1x32xf32>
    %49 = arith.divf %48, %44 : vector<1x32xf32>
    %50 = vector.broadcast %49 : vector<1x32xf32> to vector<8x32xf32>
    %51 = arith.mulf %47, %50 : vector<8x32xf32>
    %52 = tpu.concatenate %25, %51 in 0 : vector<8x32xf32>, vector<8x32xf32> -> vector<16x32xf32>
    %53 = arith.truncf %52 : vector<16x32xf32> to vector<16x32xbf16>
    %c0_53 = arith.constant 0 : index
    %c0_54 = arith.constant 0 : index
    %c0_55 = arith.constant 0 : index
    %c0_56 = arith.constant 0 : index
    %54 = vector.load %arg7[%c0_53, %c0_54, %c0_55, %c0_56] : memref<1x8x16x32xbf16, #tpu.memory_space<vmem>>, vector<1x1x16x32xbf16>
    %55 = vector.shape_cast %54 : vector<1x1x16x32xbf16> to vector<16x32xbf16>
    %56 = vector.shape_cast %53 : vector<16x32xbf16> to vector<1x1x16x32xbf16>
    tpu.vector_store %arg7[%c0_53, %c0_54, %c0_55, %c0_56], %56 {strides = array<i32>} : memref<1x8x16x32xbf16, #tpu.memory_space<vmem>>, vector<1x1x16x32xbf16>,
    %c0_57 = arith.constant 0 : index
    %c1_58 = arith.constant 1 : index
    %c0_59 = arith.constant 0 : index
    %c0_60 = arith.constant 0 : index
    %c0_61 = arith.constant 0 : index
    %57 = vector.load %arg2[%c0_57, %c1_58, %c0_59, %c0_60, %c0_61] : memref<1x8x2x8x32xbf16, #tpu.memory_space<vmem>>, vector<1x1x1x8x32xbf16>
    %58 = vector.shape_cast %57 : vector<1x1x1x8x32xbf16> to vector<8x32xbf16>
    %c0_62 = arith.constant 0 : index
    %c1_63 = arith.constant 1 : index
    %c0_64 = arith.constant 0 : index
    %c0_65 = arith.constant 0 : index
    %c0_66 = arith.constant 0 : index
    %59 = vector.load %arg3[%c0_62, %c1_63, %c0_64, %c0_65, %c0_66] : memref<1x8x2x8x8xbf16, #tpu.memory_space<vmem>>, vector<1x1x1x8x8xbf16>
    %60 = vector.shape_cast %59 : vector<1x1x1x8x8xbf16> to vector<8x8xbf16>
    %c0_67 = arith.constant 0 : index
    %c1_68 = arith.constant 1 : index
    %c0_69 = arith.constant 0 : index
    %c0_70 = arith.constant 0 : index
    %c0_71 = arith.constant 0 : index
    %61 = vector.load %arg4[%c0_67, %c1_68, %c0_69, %c0_70, %c0_71] : memref<1x8x2x8x8xbf16, #tpu.memory_space<vmem>>, vector<1x1x1x8x8xbf16>
    %62 = vector.shape_cast %61 : vector<1x1x1x8x8xbf16> to vector<8x8xbf16>
    %c0_72 = arith.constant 0 : index
    %c0_73 = arith.constant 0 : index
    %c0_74 = arith.constant 0 : index
    %c0_75 = arith.constant 0 : index
    %63 = vector.load %arg5[%c0_72, %c0_73, %c0_74, %c0_75] : memref<1x2x8x32xf32, #tpu.memory_space<vmem>>, vector<1x1x8x32xf32>
    %64 = vector.shape_cast %63 : vector<1x1x8x32xf32> to vector<8x32xf32>
    %c0_76 = arith.constant 0 : index
    %c0_77 = arith.constant 0 : index
    %c0_78 = arith.constant 0 : index
    %c0_79 = arith.constant 0 : index
    %65 = vector.load %arg6[%c0_76, %c0_77, %c0_78, %c0_79] : memref<1x2x8x32xf32, #tpu.memory_space<vmem>>, vector<1x1x8x32xf32>
    %66 = vector.shape_cast %65 : vector<1x1x8x32xf32> to vector<8x32xf32>
    %cst_80 = arith.constant dense<0.000000e+00> : vector<8x32xf32>
    %67 = tpu.matmul %60, %58, %cst_80 {dimension_numbers = #tpu.dot_dimension_numbers<[1], [0], [0], [1], [0, 0, 1, 1], [], []>} : vector<8x8xbf16>, vector<8x32xbf16>, vector<8x32xf32> -> vector<8x32xf32>
    %68 = arith.addf %67, %64 : vector<8x32xf32>
    %cst_81 = arith.constant dense<0xFF800000> : vector<32xf32>
    %69 = vector.multi_reduction <maximumf>, %68, %cst_81 [0] : vector<8x32xf32> to vector<32xf32>
    %70 = vector.shape_cast %69 : vector<32xf32> to vector<1x32xf32>
    %71 = vector.broadcast %70 : vector<1x32xf32> to vector<8x32xf32>
    %72 = arith.subf %68, %71 : vector<8x32xf32>
    %73 = math.exp %72 : vector<8x32xf32>
    %cst_82 = arith.constant dense<0.000000e+00> : vector<32xf32>
    %74 = vector.multi_reduction <add>, %73, %cst_82 [0] : vector<8x32xf32> to vector<32xf32>
    %75 = vector.shape_cast %74 : vector<32xf32> to vector<1x32xf32>
    %76 = arith.mulf %73, %66 : vector<8x32xf32>
    %77 = arith.truncf %76 : vector<8x32xf32> to vector<8x32xbf16>
    %cst_83 = arith.constant dense<0.000000e+00> : vector<8x32xf32>
    %78 = tpu.matmul %62, %77, %cst_83 {dimension_numbers = #tpu.dot_dimension_numbers<[1], [0], [0], [1], [0, 0, 1, 1], [], []>} : vector<8x8xbf16>, vector<8x32xbf16>, vector<8x32xf32> -> vector<8x32xf32>
    %cst_84 = arith.constant 1.000000e+00 : f32
    %79 = vector.broadcast %cst_84 : f32 to vector<1x32xf32>
    %80 = arith.divf %79, %75 : vector<1x32xf32>
    %81 = vector.broadcast %80 : vector<1x32xf32> to vector<8x32xf32>
    %82 = arith.mulf %78, %81 : vector<8x32xf32>
    %c0_85 = arith.constant 0 : index
    %c1_86 = arith.constant 1 : index
    %c1_87 = arith.constant 1 : index
    %c0_88 = arith.constant 0 : index
    %c0_89 = arith.constant 0 : index
    %83 = vector.load %arg2[%c0_85, %c1_86, %c1_87, %c0_88, %c0_89] : memref<1x8x2x8x32xbf16, #tpu.memory_space<vmem>>, vector<1x1x1x8x32xbf16>
    %84 = vector.shape_cast %83 : vector<1x1x1x8x32xbf16> to vector<8x32xbf16>
    %c0_90 = arith.constant 0 : index
    %c1_91 = arith.constant 1 : index
    %c1_92 = arith.constant 1 : index
    %c0_93 = arith.constant 0 : index
    %c0_94 = arith.constant 0 : index
    %85 = vector.load %arg3[%c0_90, %c1_91, %c1_92, %c0_93, %c0_94] : memref<1x8x2x8x8xbf16, #tpu.memory_space<vmem>>, vector<1x1x1x8x8xbf16>
    %86 = vector.shape_cast %85 : vector<1x1x1x8x8xbf16> to vector<8x8xbf16>
    %c0_95 = arith.constant 0 : index
    %c1_96 = arith.constant 1 : index
    %c1_97 = arith.constant 1 : index
    %c0_98 = arith.constant 0 : index
    %c0_99 = arith.constant 0 : index
    %87 = vector.load %arg4[%c0_95, %c1_96, %c1_97, %c0_98, %c0_99] : memref<1x8x2x8x8xbf16, #tpu.memory_space<vmem>>, vector<1x1x1x8x8xbf16>
    %88 = vector.shape_cast %87 : vector<1x1x1x8x8xbf16> to vector<8x8xbf16>
    %c0_100 = arith.constant 0 : index
    %c1_101 = arith.constant 1 : index
    %c0_102 = arith.constant 0 : index
    %c0_103 = arith.constant 0 : index
    %89 = vector.load %arg5[%c0_100, %c1_101, %c0_102, %c0_103] : memref<1x2x8x32xf32, #tpu.memory_space<vmem>>, vector<1x1x8x32xf32>
    %90 = vector.shape_cast %89 : vector<1x1x8x32xf32> to vector<8x32xf32>
    %c0_104 = arith.constant 0 : index
    %c1_105 = arith.constant 1 : index
    %c0_106 = arith.constant 0 : index
    %c0_107 = arith.constant 0 : index
    %91 = vector.load %arg6[%c0_104, %c1_105, %c0_106, %c0_107] : memref<1x2x8x32xf32, #tpu.memory_space<vmem>>, vector<1x1x8x32xf32>
    %92 = vector.shape_cast %91 : vector<1x1x8x32xf32> to vector<8x32xf32>
    %cst_108 = arith.constant dense<0.000000e+00> : vector<8x32xf32>
    %93 = tpu.matmul %86, %84, %cst_108 {dimension_numbers = #tpu.dot_dimension_numbers<[1], [0], [0], [1], [0, 0, 1, 1], [], []>} : vector<8x8xbf16>, vector<8x32xbf16>, vector<8x32xf32> -> vector<8x32xf32>
    %94 = arith.addf %93, %90 : vector<8x32xf32>
    %cst_109 = arith.constant dense<0xFF800000> : vector<32xf32>
    %95 = vector.multi_reduction <maximumf>, %94, %cst_109 [0] : vector<8x32xf32> to vector<32xf32>
    %96 = vector.shape_cast %95 : vector<32xf32> to vector<1x32xf32>
    %97 = vector.broadcast %96 : vector<1x32xf32> to vector<8x32xf32>
    %98 = arith.subf %94, %97 : vector<8x32xf32>
    %99 = math.exp %98 : vector<8x32xf32>
    %cst_110 = arith.constant dense<0.000000e+00> : vector<32xf32>
    %100 = vector.multi_reduction <add>, %99, %cst_110 [0] : vector<8x32xf32> to vector<32xf32>
    %101 = vector.shape_cast %100 : vector<32xf32> to vector<1x32xf32>
    %102 = arith.mulf %99, %92 : vector<8x32xf32>
    %103 = arith.truncf %102 : vector<8x32xf32> to vector<8x32xbf16>
    %cst_111 = arith.constant dense<0.000000e+00> : vector<8x32xf32>
    %104 = tpu.matmul %88, %103, %cst_111 {dimension_numbers = #tpu.dot_dimension_numbers<[1], [0], [0], [1], [0, 0, 1, 1], [], []>} : vector<8x8xbf16>, vector<8x32xbf16>, vector<8x32xf32> -> vector<8x32xf32>
    %cst_112 = arith.constant 1.000000e+00 : f32
    %105 = vector.broadcast %cst_112 : f32 to vector<1x32xf32>
    %106 = arith.divf %105, %101 : vector<1x32xf32>
    %107 = vector.broadcast %106 : vector<1x32xf32> to vector<8x32xf32>
    %108 = arith.mulf %104, %107 : vector<8x32xf32>
    %109 = tpu.concatenate %82, %108 in 0 : vector<8x32xf32>, vector<8x32xf32> -> vector<16x32xf32>
    %110 = arith.truncf %109 : vector<16x32xf32> to vector<16x32xbf16>
    %c0_113 = arith.constant 0 : index
    %c1_114 = arith.constant 1 : index
    %c0_115 = arith.constant 0 : index
    %c0_116 = arith.constant 0 : index
    %111 = vector.load %arg7[%c0_113, %c1_114, %c0_115, %c0_116] : memref<1x8x16x32xbf16, #tpu.memory_space<vmem>>, vector<1x1x16x32xbf16>
    %112 = vector.shape_cast %111 : vector<1x1x16x32xbf16> to vector<16x32xbf16>
    %113 = vector.shape_cast %110 : vector<16x32xbf16> to vector<1x1x16x32xbf16>
    tpu.vector_store %arg7[%c0_113, %c1_114, %c0_115, %c0_116], %113 {strides = array<i32>} : memref<1x8x16x32xbf16, #tpu.memory_space<vmem>>, vector<1x1x16x32xbf16>,
    %c0_117 = arith.constant 0 : index
    %c2 = arith.constant 2 : index
    %c0_118 = arith.constant 0 : index
    %c0_119 = arith.constant 0 : index
    %c0_120 = arith.constant 0 : index
    %114 = vector.load %arg2[%c0_117, %c2, %c0_118, %c0_119, %c0_120] : memref<1x8x2x8x32xbf16, #tpu.memory_space<vmem>>, vector<1x1x1x8x32xbf16>
    %115 = vector.shape_cast %114 : vector<1x1x1x8x32xbf16> to vector<8x32xbf16>
    %c0_121 = arith.constant 0 : index
    %c2_122 = arith.constant 2 : index
    %c0_123 = arith.constant 0 : index
    %c0_124 = arith.constant 0 : index
    %c0_125 = arith.constant 0 : index
    %116 = vector.load %arg3[%c0_121, %c2_122, %c0_123, %c0_124, %c0_125] : memref<1x8x2x8x8xbf16, #tpu.memory_space<vmem>>, vector<1x1x1x8x8xbf16>
    %117 = vector.shape_cast %116 : vector<1x1x1x8x8xbf16> to vector<8x8xbf16>
    %c0_126 = arith.constant 0 : index
    %c2_127 = arith.constant 2 : index
    %c0_128 = arith.constant 0 : index
    %c0_129 = arith.constant 0 : index
    %c0_130 = arith.constant 0 : index
    %118 = vector.load %arg4[%c0_126, %c2_127, %c0_128, %c0_129, %c0_130] : memref<1x8x2x8x8xbf16, #tpu.memory_space<vmem>>, vector<1x1x1x8x8xbf16>
    %119 = vector.shape_cast %118 : vector<1x1x1x8x8xbf16> to vector<8x8xbf16>
    %c0_131 = arith.constant 0 : index
    %c0_132 = arith.constant 0 : index
    %c0_133 = arith.constant 0 : index
    %c0_134 = arith.constant 0 : index
    %120 = vector.load %arg5[%c0_131, %c0_132, %c0_133, %c0_134] : memref<1x2x8x32xf32, #tpu.memory_space<vmem>>, vector<1x1x8x32xf32>
    %121 = vector.shape_cast %120 : vector<1x1x8x32xf32> to vector<8x32xf32>
    %c0_135 = arith.constant 0 : index
    %c0_136 = arith.constant 0 : index
    %c0_137 = arith.constant 0 : index
    %c0_138 = arith.constant 0 : index
    %122 = vector.load %arg6[%c0_135, %c0_136, %c0_137, %c0_138] : memref<1x2x8x32xf32, #tpu.memory_space<vmem>>, vector<1x1x8x32xf32>
    %123 = vector.shape_cast %122 : vector<1x1x8x32xf32> to vector<8x32xf32>
    %cst_139 = arith.constant dense<0.000000e+00> : vector<8x32xf32>
    %124 = tpu.matmul %117, %115, %cst_139 {dimension_numbers = #tpu.dot_dimension_numbers<[1], [0], [0], [1], [0, 0, 1, 1], [], []>} : vector<8x8xbf16>, vector<8x32xbf16>, vector<8x32xf32> -> vector<8x32xf32>
    %125 = arith.addf %124, %121 : vector<8x32xf32>
    %cst_140 = arith.constant dense<0xFF800000> : vector<32xf32>
    %126 = vector.multi_reduction <maximumf>, %125, %cst_140 [0] : vector<8x32xf32> to vector<32xf32>
    %127 = vector.shape_cast %126 : vector<32xf32> to vector<1x32xf32>
    %128 = vector.broadcast %127 : vector<1x32xf32> to vector<8x32xf32>
    %129 = arith.subf %125, %128 : vector<8x32xf32>
    %130 = math.exp %129 : vector<8x32xf32>
    %cst_141 = arith.constant dense<0.000000e+00> : vector<32xf32>
    %131 = vector.multi_reduction <add>, %130, %cst_141 [0] : vector<8x32xf32> to vector<32xf32>
    %132 = vector.shape_cast %131 : vector<32xf32> to vector<1x32xf32>
    %133 = arith.mulf %130, %123 : vector<8x32xf32>
    %134 = arith.truncf %133 : vector<8x32xf32> to vector<8x32xbf16>
    %cst_142 = arith.constant dense<0.000000e+00> : vector<8x32xf32>
    %135 = tpu.matmul %119, %134, %cst_142 {dimension_numbers = #tpu.dot_dimension_numbers<[1], [0], [0], [1], [0, 0, 1, 1], [], []>} : vector<8x8xbf16>, vector<8x32xbf16>, vector<8x32xf32> -> vector<8x32xf32>
    %cst_143 = arith.constant 1.000000e+00 : f32
    %136 = vector.broadcast %cst_143 : f32 to vector<1x32xf32>
    %137 = arith.divf %136, %132 : vector<1x32xf32>
    %138 = vector.broadcast %137 : vector<1x32xf32> to vector<8x32xf32>
    %139 = arith.mulf %135, %138 : vector<8x32xf32>
    %c0_144 = arith.constant 0 : index
    %c2_145 = arith.constant 2 : index
    %c1_146 = arith.constant 1 : index
    %c0_147 = arith.constant 0 : index
    %c0_148 = arith.constant 0 : index
    %140 = vector.load %arg2[%c0_144, %c2_145, %c1_146, %c0_147, %c0_148] : memref<1x8x2x8x32xbf16, #tpu.memory_space<vmem>>, vector<1x1x1x8x32xbf16>
    %141 = vector.shape_cast %140 : vector<1x1x1x8x32xbf16> to vector<8x32xbf16>
    %c0_149 = arith.constant 0 : index
    %c2_150 = arith.constant 2 : index
    %c1_151 = arith.constant 1 : index
    %c0_152 = arith.constant 0 : index
    %c0_153 = arith.constant 0 : index
    %142 = vector.load %arg3[%c0_149, %c2_150, %c1_151, %c0_152, %c0_153] : memref<1x8x2x8x8xbf16, #tpu.memory_space<vmem>>, vector<1x1x1x8x8xbf16>
    %143 = vector.shape_cast %142 : vector<1x1x1x8x8xbf16> to vector<8x8xbf16>
    %c0_154 = arith.constant 0 : index
    %c2_155 = arith.constant 2 : index
    %c1_156 = arith.constant 1 : index
    %c0_157 = arith.constant 0 : index
    %c0_158 = arith.constant 0 : index
    %144 = vector.load %arg4[%c0_154, %c2_155, %c1_156, %c0_157, %c0_158] : memref<1x8x2x8x8xbf16, #tpu.memory_space<vmem>>, vector<1x1x1x8x8xbf16>
    %145 = vector.shape_cast %144 : vector<1x1x1x8x8xbf16> to vector<8x8xbf16>
    %c0_159 = arith.constant 0 : index
    %c1_160 = arith.constant 1 : index
    %c0_161 = arith.constant 0 : index
    %c0_162 = arith.constant 0 : index
    %146 = vector.load %arg5[%c0_159, %c1_160, %c0_161, %c0_162] : memref<1x2x8x32xf32, #tpu.memory_space<vmem>>, vector<1x1x8x32xf32>
    %147 = vector.shape_cast %146 : vector<1x1x8x32xf32> to vector<8x32xf32>
    %c0_163 = arith.constant 0 : index
    %c1_164 = arith.constant 1 : index
    %c0_165 = arith.constant 0 : index
    %c0_166 = arith.constant 0 : index
    %148 = vector.load %arg6[%c0_163, %c1_164, %c0_165, %c0_166] : memref<1x2x8x32xf32, #tpu.memory_space<vmem>>, vector<1x1x8x32xf32>
    %149 = vector.shape_cast %148 : vector<1x1x8x32xf32> to vector<8x32xf32>
    %cst_167 = arith.constant dense<0.000000e+00> : vector<8x32xf32>
    %150 = tpu.matmul %143, %141, %cst_167 {dimension_numbers = #tpu.dot_dimension_numbers<[1], [0], [0], [1], [0, 0, 1, 1], [], []>} : vector<8x8xbf16>, vector<8x32xbf16>, vector<8x32xf32> -> vector<8x32xf32>
    %151 = arith.addf %150, %147 : vector<8x32xf32>
    %cst_168 = arith.constant dense<0xFF800000> : vector<32xf32>
    %152 = vector.multi_reduction <maximumf>, %151, %cst_168 [0] : vector<8x32xf32> to vector<32xf32>
    %153 = vector.shape_cast %152 : vector<32xf32> to vector<1x32xf32>
    %154 = vector.broadcast %153 : vector<1x32xf32> to vector<8x32xf32>
    %155 = arith.subf %151, %154 : vector<8x32xf32>
    %156 = math.exp %155 : vector<8x32xf32>
    %cst_169 = arith.constant dense<0.000000e+00> : vector<32xf32>
    %157 = vector.multi_reduction <add>, %156, %cst_169 [0] : vector<8x32xf32> to vector<32xf32>
    %158 = vector.shape_cast %157 : vector<32xf32> to vector<1x32xf32>
    %159 = arith.mulf %156, %149 : vector<8x32xf32>
    %160 = arith.truncf %159 : vector<8x32xf32> to vector<8x32xbf16>
    %cst_170 = arith.constant dense<0.000000e+00> : vector<8x32xf32>
    %161 = tpu.matmul %145, %160, %cst_170 {dimension_numbers = #tpu.dot_dimension_numbers<[1], [0], [0], [1], [0, 0, 1, 1], [], []>} : vector<8x8xbf16>, vector<8x32xbf16>, vector<8x32xf32> -> vector<8x32xf32>
    %cst_171 = arith.constant 1.000000e+00 : f32
    %162 = vector.broadcast %cst_171 : f32 to vector<1x32xf32>
    %163 = arith.divf %162, %158 : vector<1x32xf32>
    %164 = vector.broadcast %163 : vector<1x32xf32> to vector<8x32xf32>
    %165 = arith.mulf %161, %164 : vector<8x32xf32>
    %166 = tpu.concatenate %139, %165 in 0 : vector<8x32xf32>, vector<8x32xf32> -> vector<16x32xf32>
    %167 = arith.truncf %166 : vector<16x32xf32> to vector<16x32xbf16>
    %c0_172 = arith.constant 0 : index
    %c2_173 = arith.constant 2 : index
    %c0_174 = arith.constant 0 : index
    %c0_175 = arith.constant 0 : index
    %168 = vector.load %arg7[%c0_172, %c2_173, %c0_174, %c0_175] : memref<1x8x16x32xbf16, #tpu.memory_space<vmem>>, vector<1x1x16x32xbf16>
    %169 = vector.shape_cast %168 : vector<1x1x16x32xbf16> to vector<16x32xbf16>
    %170 = vector.shape_cast %167 : vector<16x32xbf16> to vector<1x1x16x32xbf16>
    tpu.vector_store %arg7[%c0_172, %c2_173, %c0_174, %c0_175], %170 {strides = array<i32>} : memref<1x8x16x32xbf16, #tpu.memory_space<vmem>>, vector<1x1x16x32xbf16>,
    %c0_176 = arith.constant 0 : index
    %c3 = arith.constant 3 : index
    %c0_177 = arith.constant 0 : index
    %c0_178 = arith.constant 0 : index
    %c0_179 = arith.constant 0 : index
    %171 = vector.load %arg2[%c0_176, %c3, %c0_177, %c0_178, %c0_179] : memref<1x8x2x8x32xbf16, #tpu.memory_space<vmem>>, vector<1x1x1x8x32xbf16>
    %172 = vector.shape_cast %171 : vector<1x1x1x8x32xbf16> to vector<8x32xbf16>
    %c0_180 = arith.constant 0 : index
    %c3_181 = arith.constant 3 : index
    %c0_182 = arith.constant 0 : index
    %c0_183 = arith.constant 0 : index
    %c0_184 = arith.constant 0 : index
    %173 = vector.load %arg3[%c0_180, %c3_181, %c0_182, %c0_183, %c0_184] : memref<1x8x2x8x8xbf16, #tpu.memory_space<vmem>>, vector<1x1x1x8x8xbf16>
    %174 = vector.shape_cast %173 : vector<1x1x1x8x8xbf16> to vector<8x8xbf16>
    %c0_185 = arith.constant 0 : index
    %c3_186 = arith.constant 3 : index
    %c0_187 = arith.constant 0 : index
    %c0_188 = arith.constant 0 : index
    %c0_189 = arith.constant 0 : index
    %175 = vector.load %arg4[%c0_185, %c3_186, %c0_187, %c0_188, %c0_189] : memref<1x8x2x8x8xbf16, #tpu.memory_space<vmem>>, vector<1x1x1x8x8xbf16>
    %176 = vector.shape_cast %175 : vector<1x1x1x8x8xbf16> to vector<8x8xbf16>
    %c0_190 = arith.constant 0 : index
    %c0_191 = arith.constant 0 : index
    %c0_192 = arith.constant 0 : index
    %c0_193 = arith.constant 0 : index
    %177 = vector.load %arg5[%c0_190, %c0_191, %c0_192, %c0_193] : memref<1x2x8x32xf32, #tpu.memory_space<vmem>>, vector<1x1x8x32xf32>
    %178 = vector.shape_cast %177 : vector<1x1x8x32xf32> to vector<8x32xf32>
    %c0_194 = arith.constant 0 : index
    %c0_195 = arith.constant 0 : index
    %c0_196 = arith.constant 0 : index
    %c0_197 = arith.constant 0 : index
    %179 = vector.load %arg6[%c0_194, %c0_195, %c0_196, %c0_197] : memref<1x2x8x32xf32, #tpu.memory_space<vmem>>, vector<1x1x8x32xf32>
    %180 = vector.shape_cast %179 : vector<1x1x8x32xf32> to vector<8x32xf32>
    %cst_198 = arith.constant dense<0.000000e+00> : vector<8x32xf32>
    %181 = tpu.matmul %174, %172, %cst_198 {dimension_numbers = #tpu.dot_dimension_numbers<[1], [0], [0], [1], [0, 0, 1, 1], [], []>} : vector<8x8xbf16>, vector<8x32xbf16>, vector<8x32xf32> -> vector<8x32xf32>
    %182 = arith.addf %181, %178 : vector<8x32xf32>
    %cst_199 = arith.constant dense<0xFF800000> : vector<32xf32>
    %183 = vector.multi_reduction <maximumf>, %182, %cst_199 [0] : vector<8x32xf32> to vector<32xf32>
    %184 = vector.shape_cast %183 : vector<32xf32> to vector<1x32xf32>
    %185 = vector.broadcast %184 : vector<1x32xf32> to vector<8x32xf32>
    %186 = arith.subf %182, %185 : vector<8x32xf32>
    %187 = math.exp %186 : vector<8x32xf32>
    %cst_200 = arith.constant dense<0.000000e+00> : vector<32xf32>
    %188 = vector.multi_reduction <add>, %187, %cst_200 [0] : vector<8x32xf32> to vector<32xf32>
    %189 = vector.shape_cast %188 : vector<32xf32> to vector<1x32xf32>
    %190 = arith.mulf %187, %180 : vector<8x32xf32>
    %191 = arith.truncf %190 : vector<8x32xf32> to vector<8x32xbf16>
    %cst_201 = arith.constant dense<0.000000e+00> : vector<8x32xf32>
    %192 = tpu.matmul %176, %191, %cst_201 {dimension_numbers = #tpu.dot_dimension_numbers<[1], [0], [0], [1], [0, 0, 1, 1], [], []>} : vector<8x8xbf16>, vector<8x32xbf16>, vector<8x32xf32> -> vector<8x32xf32>
    %cst_202 = arith.constant 1.000000e+00 : f32
    %193 = vector.broadcast %cst_202 : f32 to vector<1x32xf32>
    %194 = arith.divf %193, %189 : vector<1x32xf32>
    %195 = vector.broadcast %194 : vector<1x32xf32> to vector<8x32xf32>
    %196 = arith.mulf %192, %195 : vector<8x32xf32>
    %c0_203 = arith.constant 0 : index
    %c3_204 = arith.constant 3 : index
    %c1_205 = arith.constant 1 : index
    %c0_206 = arith.constant 0 : index
    %c0_207 = arith.constant 0 : index
    %197 = vector.load %arg2[%c0_203, %c3_204, %c1_205, %c0_206, %c0_207] : memref<1x8x2x8x32xbf16, #tpu.memory_space<vmem>>, vector<1x1x1x8x32xbf16>
    %198 = vector.shape_cast %197 : vector<1x1x1x8x32xbf16> to vector<8x32xbf16>
    %c0_208 = arith.constant 0 : index
    %c3_209 = arith.constant 3 : index
    %c1_210 = arith.constant 1 : index
    %c0_211 = arith.constant 0 : index
    %c0_212 = arith.constant 0 : index
    %199 = vector.load %arg3[%c0_208, %c3_209, %c1_210, %c0_211, %c0_212] : memref<1x8x2x8x8xbf16, #tpu.memory_space<vmem>>, vector<1x1x1x8x8xbf16>
    %200 = vector.shape_cast %199 : vector<1x1x1x8x8xbf16> to vector<8x8xbf16>
    %c0_213 = arith.constant 0 : index
    %c3_214 = arith.constant 3 : index
    %c1_215 = arith.constant 1 : index
    %c0_216 = arith.constant 0 : index
    %c0_217 = arith.constant 0 : index
    %201 = vector.load %arg4[%c0_213, %c3_214, %c1_215, %c0_216, %c0_217] : memref<1x8x2x8x8xbf16, #tpu.memory_space<vmem>>, vector<1x1x1x8x8xbf16>
    %202 = vector.shape_cast %201 : vector<1x1x1x8x8xbf16> to vector<8x8xbf16>
    %c0_218 = arith.constant 0 : index
    %c1_219 = arith.constant 1 : index
    %c0_220 = arith.constant 0 : index
    %c0_221 = arith.constant 0 : index
    %203 = vector.load %arg5[%c0_218, %c1_219, %c0_220, %c0_221] : memref<1x2x8x32xf32, #tpu.memory_space<vmem>>, vector<1x1x8x32xf32>
    %204 = vector.shape_cast %203 : vector<1x1x8x32xf32> to vector<8x32xf32>
    %c0_222 = arith.constant 0 : index
    %c1_223 = arith.constant 1 : index
    %c0_224 = arith.constant 0 : index
    %c0_225 = arith.constant 0 : index
    %205 = vector.load %arg6[%c0_222, %c1_223, %c0_224, %c0_225] : memref<1x2x8x32xf32, #tpu.memory_space<vmem>>, vector<1x1x8x32xf32>
    %206 = vector.shape_cast %205 : vector<1x1x8x32xf32> to vector<8x32xf32>
    %cst_226 = arith.constant dense<0.000000e+00> : vector<8x32xf32>
    %207 = tpu.matmul %200, %198, %cst_226 {dimension_numbers = #tpu.dot_dimension_numbers<[1], [0], [0], [1], [0, 0, 1, 1], [], []>} : vector<8x8xbf16>, vector<8x32xbf16>, vector<8x32xf32> -> vector<8x32xf32>
    %208 = arith.addf %207, %204 : vector<8x32xf32>
    %cst_227 = arith.constant dense<0xFF800000> : vector<32xf32>
    %209 = vector.multi_reduction <maximumf>, %208, %cst_227 [0] : vector<8x32xf32> to vector<32xf32>
    %210 = vector.shape_cast %209 : vector<32xf32> to vector<1x32xf32>
    %211 = vector.broadcast %210 : vector<1x32xf32> to vector<8x32xf32>
    %212 = arith.subf %208, %211 : vector<8x32xf32>
    %213 = math.exp %212 : vector<8x32xf32>
    %cst_228 = arith.constant dense<0.000000e+00> : vector<32xf32>
    %214 = vector.multi_reduction <add>, %213, %cst_228 [0] : vector<8x32xf32> to vector<32xf32>
    %215 = vector.shape_cast %214 : vector<32xf32> to vector<1x32xf32>
    %216 = arith.mulf %213, %206 : vector<8x32xf32>
    %217 = arith.truncf %216 : vector<8x32xf32> to vector<8x32xbf16>
    %cst_229 = arith.constant dense<0.000000e+00> : vector<8x32xf32>
    %218 = tpu.matmul %202, %217, %cst_229 {dimension_numbers = #tpu.dot_dimension_numbers<[1], [0], [0], [1], [0, 0, 1, 1], [], []>} : vector<8x8xbf16>, vector<8x32xbf16>, vector<8x32xf32> -> vector<8x32xf32>
    %cst_230 = arith.constant 1.000000e+00 : f32
    %219 = vector.broadcast %cst_230 : f32 to vector<1x32xf32>
    %220 = arith.divf %219, %215 : vector<1x32xf32>
    %221 = vector.broadcast %220 : vector<1x32xf32> to vector<8x32xf32>
    %222 = arith.mulf %218, %221 : vector<8x32xf32>
    %223 = tpu.concatenate %196, %222 in 0 : vector<8x32xf32>, vector<8x32xf32> -> vector<16x32xf32>
    %224 = arith.truncf %223 : vector<16x32xf32> to vector<16x32xbf16>
    %c0_231 = arith.constant 0 : index
    %c3_232 = arith.constant 3 : index
    %c0_233 = arith.constant 0 : index
    %c0_234 = arith.constant 0 : index
    %225 = vector.load %arg7[%c0_231, %c3_232, %c0_233, %c0_234] : memref<1x8x16x32xbf16, #tpu.memory_space<vmem>>, vector<1x1x16x32xbf16>
    %226 = vector.shape_cast %225 : vector<1x1x16x32xbf16> to vector<16x32xbf16>
    %227 = vector.shape_cast %224 : vector<16x32xbf16> to vector<1x1x16x32xbf16>
    tpu.vector_store %arg7[%c0_231, %c3_232, %c0_233, %c0_234], %227 {strides = array<i32>} : memref<1x8x16x32xbf16, #tpu.memory_space<vmem>>, vector<1x1x16x32xbf16>,
    %c0_235 = arith.constant 0 : index
    %c4 = arith.constant 4 : index
    %c0_236 = arith.constant 0 : index
    %c0_237 = arith.constant 0 : index
    %c0_238 = arith.constant 0 : index
    %228 = vector.load %arg2[%c0_235, %c4, %c0_236, %c0_237, %c0_238] : memref<1x8x2x8x32xbf16, #tpu.memory_space<vmem>>, vector<1x1x1x8x32xbf16>
    %229 = vector.shape_cast %228 : vector<1x1x1x8x32xbf16> to vector<8x32xbf16>
    %c0_239 = arith.constant 0 : index
    %c4_240 = arith.constant 4 : index
    %c0_241 = arith.constant 0 : index
    %c0_242 = arith.constant 0 : index
    %c0_243 = arith.constant 0 : index
    %230 = vector.load %arg3[%c0_239, %c4_240, %c0_241, %c0_242, %c0_243] : memref<1x8x2x8x8xbf16, #tpu.memory_space<vmem>>, vector<1x1x1x8x8xbf16>
    %231 = vector.shape_cast %230 : vector<1x1x1x8x8xbf16> to vector<8x8xbf16>
    %c0_244 = arith.constant 0 : index
    %c4_245 = arith.constant 4 : index
    %c0_246 = arith.constant 0 : index
    %c0_247 = arith.constant 0 : index
    %c0_248 = arith.constant 0 : index
    %232 = vector.load %arg4[%c0_244, %c4_245, %c0_246, %c0_247, %c0_248] : memref<1x8x2x8x8xbf16, #tpu.memory_space<vmem>>, vector<1x1x1x8x8xbf16>
    %233 = vector.shape_cast %232 : vector<1x1x1x8x8xbf16> to vector<8x8xbf16>
    %c0_249 = arith.constant 0 : index
    %c0_250 = arith.constant 0 : index
    %c0_251 = arith.constant 0 : index
    %c0_252 = arith.constant 0 : index
    %234 = vector.load %arg5[%c0_249, %c0_250, %c0_251, %c0_252] : memref<1x2x8x32xf32, #tpu.memory_space<vmem>>, vector<1x1x8x32xf32>
    %235 = vector.shape_cast %234 : vector<1x1x8x32xf32> to vector<8x32xf32>
    %c0_253 = arith.constant 0 : index
    %c0_254 = arith.constant 0 : index
    %c0_255 = arith.constant 0 : index
    %c0_256 = arith.constant 0 : index
    %236 = vector.load %arg6[%c0_253, %c0_254, %c0_255, %c0_256] : memref<1x2x8x32xf32, #tpu.memory_space<vmem>>, vector<1x1x8x32xf32>
    %237 = vector.shape_cast %236 : vector<1x1x8x32xf32> to vector<8x32xf32>
    %cst_257 = arith.constant dense<0.000000e+00> : vector<8x32xf32>
    %238 = tpu.matmul %231, %229, %cst_257 {dimension_numbers = #tpu.dot_dimension_numbers<[1], [0], [0], [1], [0, 0, 1, 1], [], []>} : vector<8x8xbf16>, vector<8x32xbf16>, vector<8x32xf32> -> vector<8x32xf32>
    %239 = arith.addf %238, %235 : vector<8x32xf32>
    %cst_258 = arith.constant dense<0xFF800000> : vector<32xf32>
    %240 = vector.multi_reduction <maximumf>, %239, %cst_258 [0] : vector<8x32xf32> to vector<32xf32>
    %241 = vector.shape_cast %240 : vector<32xf32> to vector<1x32xf32>
    %242 = vector.broadcast %241 : vector<1x32xf32> to vector<8x32xf32>
    %243 = arith.subf %239, %242 : vector<8x32xf32>
    %244 = math.exp %243 : vector<8x32xf32>
    %cst_259 = arith.constant dense<0.000000e+00> : vector<32xf32>
    %245 = vector.multi_reduction <add>, %244, %cst_259 [0] : vector<8x32xf32> to vector<32xf32>
    %246 = vector.shape_cast %245 : vector<32xf32> to vector<1x32xf32>
    %247 = arith.mulf %244, %237 : vector<8x32xf32>
    %248 = arith.truncf %247 : vector<8x32xf32> to vector<8x32xbf16>
    %cst_260 = arith.constant dense<0.000000e+00> : vector<8x32xf32>
    %249 = tpu.matmul %233, %248, %cst_260 {dimension_numbers = #tpu.dot_dimension_numbers<[1], [0], [0], [1], [0, 0, 1, 1], [], []>} : vector<8x8xbf16>, vector<8x32xbf16>, vector<8x32xf32> -> vector<8x32xf32>
    %cst_261 = arith.constant 1.000000e+00 : f32
    %250 = vector.broadcast %cst_261 : f32 to vector<1x32xf32>
    %251 = arith.divf %250, %246 : vector<1x32xf32>
    %252 = vector.broadcast %251 : vector<1x32xf32> to vector<8x32xf32>
    %253 = arith.mulf %249, %252 : vector<8x32xf32>
    %c0_262 = arith.constant 0 : index
    %c4_263 = arith.constant 4 : index
    %c1_264 = arith.constant 1 : index
    %c0_265 = arith.constant 0 : index
    %c0_266 = arith.constant 0 : index
    %254 = vector.load %arg2[%c0_262, %c4_263, %c1_264, %c0_265, %c0_266] : memref<1x8x2x8x32xbf16, #tpu.memory_space<vmem>>, vector<1x1x1x8x32xbf16>
    %255 = vector.shape_cast %254 : vector<1x1x1x8x32xbf16> to vector<8x32xbf16>
    %c0_267 = arith.constant 0 : index
    %c4_268 = arith.constant 4 : index
    %c1_269 = arith.constant 1 : index
    %c0_270 = arith.constant 0 : index
    %c0_271 = arith.constant 0 : index
    %256 = vector.load %arg3[%c0_267, %c4_268, %c1_269, %c0_270, %c0_271] : memref<1x8x2x8x8xbf16, #tpu.memory_space<vmem>>, vector<1x1x1x8x8xbf16>
    %257 = vector.shape_cast %256 : vector<1x1x1x8x8xbf16> to vector<8x8xbf16>
    %c0_272 = arith.constant 0 : index
    %c4_273 = arith.constant 4 : index
    %c1_274 = arith.constant 1 : index
    %c0_275 = arith.constant 0 : index
    %c0_276 = arith.constant 0 : index
    %258 = vector.load %arg4[%c0_272, %c4_273, %c1_274, %c0_275, %c0_276] : memref<1x8x2x8x8xbf16, #tpu.memory_space<vmem>>, vector<1x1x1x8x8xbf16>
    %259 = vector.shape_cast %258 : vector<1x1x1x8x8xbf16> to vector<8x8xbf16>
    %c0_277 = arith.constant 0 : index
    %c1_278 = arith.constant 1 : index
    %c0_279 = arith.constant 0 : index
    %c0_280 = arith.constant 0 : index
    %260 = vector.load %arg5[%c0_277, %c1_278, %c0_279, %c0_280] : memref<1x2x8x32xf32, #tpu.memory_space<vmem>>, vector<1x1x8x32xf32>
    %261 = vector.shape_cast %260 : vector<1x1x8x32xf32> to vector<8x32xf32>
    %c0_281 = arith.constant 0 : index
    %c1_282 = arith.constant 1 : index
    %c0_283 = arith.constant 0 : index
    %c0_284 = arith.constant 0 : index
    %262 = vector.load %arg6[%c0_281, %c1_282, %c0_283, %c0_284] : memref<1x2x8x32xf32, #tpu.memory_space<vmem>>, vector<1x1x8x32xf32>
    %263 = vector.shape_cast %262 : vector<1x1x8x32xf32> to vector<8x32xf32>
    %cst_285 = arith.constant dense<0.000000e+00> : vector<8x32xf32>
    %264 = tpu.matmul %257, %255, %cst_285 {dimension_numbers = #tpu.dot_dimension_numbers<[1], [0], [0], [1], [0, 0, 1, 1], [], []>} : vector<8x8xbf16>, vector<8x32xbf16>, vector<8x32xf32> -> vector<8x32xf32>
    %265 = arith.addf %264, %261 : vector<8x32xf32>
    %cst_286 = arith.constant dense<0xFF800000> : vector<32xf32>
    %266 = vector.multi_reduction <maximumf>, %265, %cst_286 [0] : vector<8x32xf32> to vector<32xf32>
    %267 = vector.shape_cast %266 : vector<32xf32> to vector<1x32xf32>
    %268 = vector.broadcast %267 : vector<1x32xf32> to vector<8x32xf32>
    %269 = arith.subf %265, %268 : vector<8x32xf32>
    %270 = math.exp %269 : vector<8x32xf32>
    %cst_287 = arith.constant dense<0.000000e+00> : vector<32xf32>
    %271 = vector.multi_reduction <add>, %270, %cst_287 [0] : vector<8x32xf32> to vector<32xf32>
    %272 = vector.shape_cast %271 : vector<32xf32> to vector<1x32xf32>
    %273 = arith.mulf %270, %263 : vector<8x32xf32>
    %274 = arith.truncf %273 : vector<8x32xf32> to vector<8x32xbf16>
    %cst_288 = arith.constant dense<0.000000e+00> : vector<8x32xf32>
    %275 = tpu.matmul %259, %274, %cst_288 {dimension_numbers = #tpu.dot_dimension_numbers<[1], [0], [0], [1], [0, 0, 1, 1], [], []>} : vector<8x8xbf16>, vector<8x32xbf16>, vector<8x32xf32> -> vector<8x32xf32>
    %cst_289 = arith.constant 1.000000e+00 : f32
    %276 = vector.broadcast %cst_289 : f32 to vector<1x32xf32>
    %277 = arith.divf %276, %272 : vector<1x32xf32>
    %278 = vector.broadcast %277 : vector<1x32xf32> to vector<8x32xf32>
    %279 = arith.mulf %275, %278 : vector<8x32xf32>
    %280 = tpu.concatenate %253, %279 in 0 : vector<8x32xf32>, vector<8x32xf32> -> vector<16x32xf32>
    %281 = arith.truncf %280 : vector<16x32xf32> to vector<16x32xbf16>
    %c0_290 = arith.constant 0 : index
    %c4_291 = arith.constant 4 : index
    %c0_292 = arith.constant 0 : index
    %c0_293 = arith.constant 0 : index
    %282 = vector.load %arg7[%c0_290, %c4_291, %c0_292, %c0_293] : memref<1x8x16x32xbf16, #tpu.memory_space<vmem>>, vector<1x1x16x32xbf16>
    %283 = vector.shape_cast %282 : vector<1x1x16x32xbf16> to vector<16x32xbf16>
    %284 = vector.shape_cast %281 : vector<16x32xbf16> to vector<1x1x16x32xbf16>
    tpu.vector_store %arg7[%c0_290, %c4_291, %c0_292, %c0_293], %284 {strides = array<i32>} : memref<1x8x16x32xbf16, #tpu.memory_space<vmem>>, vector<1x1x16x32xbf16>,
    %c0_294 = arith.constant 0 : index
    %c5 = arith.constant 5 : index
    %c0_295 = arith.constant 0 : index
    %c0_296 = arith.constant 0 : index
    %c0_297 = arith.constant 0 : index
    %285 = vector.load %arg2[%c0_294, %c5, %c0_295, %c0_296, %c0_297] : memref<1x8x2x8x32xbf16, #tpu.memory_space<vmem>>, vector<1x1x1x8x32xbf16>
    %286 = vector.shape_cast %285 : vector<1x1x1x8x32xbf16> to vector<8x32xbf16>
    %c0_298 = arith.constant 0 : index
    %c5_299 = arith.constant 5 : index
    %c0_300 = arith.constant 0 : index
    %c0_301 = arith.constant 0 : index
    %c0_302 = arith.constant 0 : index
    %287 = vector.load %arg3[%c0_298, %c5_299, %c0_300, %c0_301, %c0_302] : memref<1x8x2x8x8xbf16, #tpu.memory_space<vmem>>, vector<1x1x1x8x8xbf16>
    %288 = vector.shape_cast %287 : vector<1x1x1x8x8xbf16> to vector<8x8xbf16>
    %c0_303 = arith.constant 0 : index
    %c5_304 = arith.constant 5 : index
    %c0_305 = arith.constant 0 : index
    %c0_306 = arith.constant 0 : index
    %c0_307 = arith.constant 0 : index
    %289 = vector.load %arg4[%c0_303, %c5_304, %c0_305, %c0_306, %c0_307] : memref<1x8x2x8x8xbf16, #tpu.memory_space<vmem>>, vector<1x1x1x8x8xbf16>
    %290 = vector.shape_cast %289 : vector<1x1x1x8x8xbf16> to vector<8x8xbf16>
    %c0_308 = arith.constant 0 : index
    %c0_309 = arith.constant 0 : index
    %c0_310 = arith.constant 0 : index
    %c0_311 = arith.constant 0 : index
    %291 = vector.load %arg5[%c0_308, %c0_309, %c0_310, %c0_311] : memref<1x2x8x32xf32, #tpu.memory_space<vmem>>, vector<1x1x8x32xf32>
    %292 = vector.shape_cast %291 : vector<1x1x8x32xf32> to vector<8x32xf32>
    %c0_312 = arith.constant 0 : index
    %c0_313 = arith.constant 0 : index
    %c0_314 = arith.constant 0 : index
    %c0_315 = arith.constant 0 : index
    %293 = vector.load %arg6[%c0_312, %c0_313, %c0_314, %c0_315] : memref<1x2x8x32xf32, #tpu.memory_space<vmem>>, vector<1x1x8x32xf32>
    %294 = vector.shape_cast %293 : vector<1x1x8x32xf32> to vector<8x32xf32>
    %cst_316 = arith.constant dense<0.000000e+00> : vector<8x32xf32>
    %295 = tpu.matmul %288, %286, %cst_316 {dimension_numbers = #tpu.dot_dimension_numbers<[1], [0], [0], [1], [0, 0, 1, 1], [], []>} : vector<8x8xbf16>, vector<8x32xbf16>, vector<8x32xf32> -> vector<8x32xf32>
    %296 = arith.addf %295, %292 : vector<8x32xf32>
    %cst_317 = arith.constant dense<0xFF800000> : vector<32xf32>
    %297 = vector.multi_reduction <maximumf>, %296, %cst_317 [0] : vector<8x32xf32> to vector<32xf32>
    %298 = vector.shape_cast %297 : vector<32xf32> to vector<1x32xf32>
    %299 = vector.broadcast %298 : vector<1x32xf32> to vector<8x32xf32>
    %300 = arith.subf %296, %299 : vector<8x32xf32>
    %301 = math.exp %300 : vector<8x32xf32>
    %cst_318 = arith.constant dense<0.000000e+00> : vector<32xf32>
    %302 = vector.multi_reduction <add>, %301, %cst_318 [0] : vector<8x32xf32> to vector<32xf32>
    %303 = vector.shape_cast %302 : vector<32xf32> to vector<1x32xf32>
    %304 = arith.mulf %301, %294 : vector<8x32xf32>
    %305 = arith.truncf %304 : vector<8x32xf32> to vector<8x32xbf16>
    %cst_319 = arith.constant dense<0.000000e+00> : vector<8x32xf32>
    %306 = tpu.matmul %290, %305, %cst_319 {dimension_numbers = #tpu.dot_dimension_numbers<[1], [0], [0], [1], [0, 0, 1, 1], [], []>} : vector<8x8xbf16>, vector<8x32xbf16>, vector<8x32xf32> -> vector<8x32xf32>
    %cst_320 = arith.constant 1.000000e+00 : f32
    %307 = vector.broadcast %cst_320 : f32 to vector<1x32xf32>
    %308 = arith.divf %307, %303 : vector<1x32xf32>
    %309 = vector.broadcast %308 : vector<1x32xf32> to vector<8x32xf32>
    %310 = arith.mulf %306, %309 : vector<8x32xf32>
    %c0_321 = arith.constant 0 : index
    %c5_322 = arith.constant 5 : index
    %c1_323 = arith.constant 1 : index
    %c0_324 = arith.constant 0 : index
    %c0_325 = arith.constant 0 : index
    %311 = vector.load %arg2[%c0_321, %c5_322, %c1_323, %c0_324, %c0_325] : memref<1x8x2x8x32xbf16, #tpu.memory_space<vmem>>, vector<1x1x1x8x32xbf16>
    %312 = vector.shape_cast %311 : vector<1x1x1x8x32xbf16> to vector<8x32xbf16>
    %c0_326 = arith.constant 0 : index
    %c5_327 = arith.constant 5 : index
    %c1_328 = arith.constant 1 : index
    %c0_329 = arith.constant 0 : index
    %c0_330 = arith.constant 0 : index
    %313 = vector.load %arg3[%c0_326, %c5_327, %c1_328, %c0_329, %c0_330] : memref<1x8x2x8x8xbf16, #tpu.memory_space<vmem>>, vector<1x1x1x8x8xbf16>
    %314 = vector.shape_cast %313 : vector<1x1x1x8x8xbf16> to vector<8x8xbf16>
    %c0_331 = arith.constant 0 : index
    %c5_332 = arith.constant 5 : index
    %c1_333 = arith.constant 1 : index
    %c0_334 = arith.constant 0 : index
    %c0_335 = arith.constant 0 : index
    %315 = vector.load %arg4[%c0_331, %c5_332, %c1_333, %c0_334, %c0_335] : memref<1x8x2x8x8xbf16, #tpu.memory_space<vmem>>, vector<1x1x1x8x8xbf16>
    %316 = vector.shape_cast %315 : vector<1x1x1x8x8xbf16> to vector<8x8xbf16>
    %c0_336 = arith.constant 0 : index
    %c1_337 = arith.constant 1 : index
    %c0_338 = arith.constant 0 : index
    %c0_339 = arith.constant 0 : index
    %317 = vector.load %arg5[%c0_336, %c1_337, %c0_338, %c0_339] : memref<1x2x8x32xf32, #tpu.memory_space<vmem>>, vector<1x1x8x32xf32>
    %318 = vector.shape_cast %317 : vector<1x1x8x32xf32> to vector<8x32xf32>
    %c0_340 = arith.constant 0 : index
    %c1_341 = arith.constant 1 : index
    %c0_342 = arith.constant 0 : index
    %c0_343 = arith.constant 0 : index
    %319 = vector.load %arg6[%c0_340, %c1_341, %c0_342, %c0_343] : memref<1x2x8x32xf32, #tpu.memory_space<vmem>>, vector<1x1x8x32xf32>
    %320 = vector.shape_cast %319 : vector<1x1x8x32xf32> to vector<8x32xf32>
    %cst_344 = arith.constant dense<0.000000e+00> : vector<8x32xf32>
    %321 = tpu.matmul %314, %312, %cst_344 {dimension_numbers = #tpu.dot_dimension_numbers<[1], [0], [0], [1], [0, 0, 1, 1], [], []>} : vector<8x8xbf16>, vector<8x32xbf16>, vector<8x32xf32> -> vector<8x32xf32>
    %322 = arith.addf %321, %318 : vector<8x32xf32>
    %cst_345 = arith.constant dense<0xFF800000> : vector<32xf32>
    %323 = vector.multi_reduction <maximumf>, %322, %cst_345 [0] : vector<8x32xf32> to vector<32xf32>
    %324 = vector.shape_cast %323 : vector<32xf32> to vector<1x32xf32>
    %325 = vector.broadcast %324 : vector<1x32xf32> to vector<8x32xf32>
    %326 = arith.subf %322, %325 : vector<8x32xf32>
    %327 = math.exp %326 : vector<8x32xf32>
    %cst_346 = arith.constant dense<0.000000e+00> : vector<32xf32>
    %328 = vector.multi_reduction <add>, %327, %cst_346 [0] : vector<8x32xf32> to vector<32xf32>
    %329 = vector.shape_cast %328 : vector<32xf32> to vector<1x32xf32>
    %330 = arith.mulf %327, %320 : vector<8x32xf32>
    %331 = arith.truncf %330 : vector<8x32xf32> to vector<8x32xbf16>
    %cst_347 = arith.constant dense<0.000000e+00> : vector<8x32xf32>
    %332 = tpu.matmul %316, %331, %cst_347 {dimension_numbers = #tpu.dot_dimension_numbers<[1], [0], [0], [1], [0, 0, 1, 1], [], []>} : vector<8x8xbf16>, vector<8x32xbf16>, vector<8x32xf32> -> vector<8x32xf32>
    %cst_348 = arith.constant 1.000000e+00 : f32
    %333 = vector.broadcast %cst_348 : f32 to vector<1x32xf32>
    %334 = arith.divf %333, %329 : vector<1x32xf32>
    %335 = vector.broadcast %334 : vector<1x32xf32> to vector<8x32xf32>
    %336 = arith.mulf %332, %335 : vector<8x32xf32>
    %337 = tpu.concatenate %310, %336 in 0 : vector<8x32xf32>, vector<8x32xf32> -> vector<16x32xf32>
    %338 = arith.truncf %337 : vector<16x32xf32> to vector<16x32xbf16>
    %c0_349 = arith.constant 0 : index
    %c5_350 = arith.constant 5 : index
    %c0_351 = arith.constant 0 : index
    %c0_352 = arith.constant 0 : index
    %339 = vector.load %arg7[%c0_349, %c5_350, %c0_351, %c0_352] : memref<1x8x16x32xbf16, #tpu.memory_space<vmem>>, vector<1x1x16x32xbf16>
    %340 = vector.shape_cast %339 : vector<1x1x16x32xbf16> to vector<16x32xbf16>
    %341 = vector.shape_cast %338 : vector<16x32xbf16> to vector<1x1x16x32xbf16>
    tpu.vector_store %arg7[%c0_349, %c5_350, %c0_351, %c0_352], %341 {strides = array<i32>} : memref<1x8x16x32xbf16, #tpu.memory_space<vmem>>, vector<1x1x16x32xbf16>,
    %c0_353 = arith.constant 0 : index
    %c6 = arith.constant 6 : index
    %c0_354 = arith.constant 0 : index
    %c0_355 = arith.constant 0 : index
    %c0_356 = arith.constant 0 : index
    %342 = vector.load %arg2[%c0_353, %c6, %c0_354, %c0_355, %c0_356] : memref<1x8x2x8x32xbf16, #tpu.memory_space<vmem>>, vector<1x1x1x8x32xbf16>
    %343 = vector.shape_cast %342 : vector<1x1x1x8x32xbf16> to vector<8x32xbf16>
    %c0_357 = arith.constant 0 : index
    %c6_358 = arith.constant 6 : index
    %c0_359 = arith.constant 0 : index
    %c0_360 = arith.constant 0 : index
    %c0_361 = arith.constant 0 : index
    %344 = vector.load %arg3[%c0_357, %c6_358, %c0_359, %c0_360, %c0_361] : memref<1x8x2x8x8xbf16, #tpu.memory_space<vmem>>, vector<1x1x1x8x8xbf16>
    %345 = vector.shape_cast %344 : vector<1x1x1x8x8xbf16> to vector<8x8xbf16>
    %c0_362 = arith.constant 0 : index
    %c6_363 = arith.constant 6 : index
    %c0_364 = arith.constant 0 : index
    %c0_365 = arith.constant 0 : index
    %c0_366 = arith.constant 0 : index
    %346 = vector.load %arg4[%c0_362, %c6_363, %c0_364, %c0_365, %c0_366] : memref<1x8x2x8x8xbf16, #tpu.memory_space<vmem>>, vector<1x1x1x8x8xbf16>
    %347 = vector.shape_cast %346 : vector<1x1x1x8x8xbf16> to vector<8x8xbf16>
    %c0_367 = arith.constant 0 : index
    %c0_368 = arith.constant 0 : index
    %c0_369 = arith.constant 0 : index
    %c0_370 = arith.constant 0 : index
    %348 = vector.load %arg5[%c0_367, %c0_368, %c0_369, %c0_370] : memref<1x2x8x32xf32, #tpu.memory_space<vmem>>, vector<1x1x8x32xf32>
    %349 = vector.shape_cast %348 : vector<1x1x8x32xf32> to vector<8x32xf32>
    %c0_371 = arith.constant 0 : index
    %c0_372 = arith.constant 0 : index
    %c0_373 = arith.constant 0 : index
    %c0_374 = arith.constant 0 : index
    %350 = vector.load %arg6[%c0_371, %c0_372, %c0_373, %c0_374] : memref<1x2x8x32xf32, #tpu.memory_space<vmem>>, vector<1x1x8x32xf32>
    %351 = vector.shape_cast %350 : vector<1x1x8x32xf32> to vector<8x32xf32>
    %cst_375 = arith.constant dense<0.000000e+00> : vector<8x32xf32>
    %352 = tpu.matmul %345, %343, %cst_375 {dimension_numbers = #tpu.dot_dimension_numbers<[1], [0], [0], [1], [0, 0, 1, 1], [], []>} : vector<8x8xbf16>, vector<8x32xbf16>, vector<8x32xf32> -> vector<8x32xf32>
    %353 = arith.addf %352, %349 : vector<8x32xf32>
    %cst_376 = arith.constant dense<0xFF800000> : vector<32xf32>
    %354 = vector.multi_reduction <maximumf>, %353, %cst_376 [0] : vector<8x32xf32> to vector<32xf32>
    %355 = vector.shape_cast %354 : vector<32xf32> to vector<1x32xf32>
    %356 = vector.broadcast %355 : vector<1x32xf32> to vector<8x32xf32>
    %357 = arith.subf %353, %356 : vector<8x32xf32>
    %358 = math.exp %357 : vector<8x32xf32>
    %cst_377 = arith.constant dense<0.000000e+00> : vector<32xf32>
    %359 = vector.multi_reduction <add>, %358, %cst_377 [0] : vector<8x32xf32> to vector<32xf32>
    %360 = vector.shape_cast %359 : vector<32xf32> to vector<1x32xf32>
    %361 = arith.mulf %358, %351 : vector<8x32xf32>
    %362 = arith.truncf %361 : vector<8x32xf32> to vector<8x32xbf16>
    %cst_378 = arith.constant dense<0.000000e+00> : vector<8x32xf32>
    %363 = tpu.matmul %347, %362, %cst_378 {dimension_numbers = #tpu.dot_dimension_numbers<[1], [0], [0], [1], [0, 0, 1, 1], [], []>} : vector<8x8xbf16>, vector<8x32xbf16>, vector<8x32xf32> -> vector<8x32xf32>
    %cst_379 = arith.constant 1.000000e+00 : f32
    %364 = vector.broadcast %cst_379 : f32 to vector<1x32xf32>
    %365 = arith.divf %364, %360 : vector<1x32xf32>
    %366 = vector.broadcast %365 : vector<1x32xf32> to vector<8x32xf32>
    %367 = arith.mulf %363, %366 : vector<8x32xf32>
    %c0_380 = arith.constant 0 : index
    %c6_381 = arith.constant 6 : index
    %c1_382 = arith.constant 1 : index
    %c0_383 = arith.constant 0 : index
    %c0_384 = arith.constant 0 : index
    %368 = vector.load %arg2[%c0_380, %c6_381, %c1_382, %c0_383, %c0_384] : memref<1x8x2x8x32xbf16, #tpu.memory_space<vmem>>, vector<1x1x1x8x32xbf16>
    %369 = vector.shape_cast %368 : vector<1x1x1x8x32xbf16> to vector<8x32xbf16>
    %c0_385 = arith.constant 0 : index
    %c6_386 = arith.constant 6 : index
    %c1_387 = arith.constant 1 : index
    %c0_388 = arith.constant 0 : index
    %c0_389 = arith.constant 0 : index
    %370 = vector.load %arg3[%c0_385, %c6_386, %c1_387, %c0_388, %c0_389] : memref<1x8x2x8x8xbf16, #tpu.memory_space<vmem>>, vector<1x1x1x8x8xbf16>
    %371 = vector.shape_cast %370 : vector<1x1x1x8x8xbf16> to vector<8x8xbf16>
    %c0_390 = arith.constant 0 : index
    %c6_391 = arith.constant 6 : index
    %c1_392 = arith.constant 1 : index
    %c0_393 = arith.constant 0 : index
    %c0_394 = arith.constant 0 : index
    %372 = vector.load %arg4[%c0_390, %c6_391, %c1_392, %c0_393, %c0_394] : memref<1x8x2x8x8xbf16, #tpu.memory_space<vmem>>, vector<1x1x1x8x8xbf16>
    %373 = vector.shape_cast %372 : vector<1x1x1x8x8xbf16> to vector<8x8xbf16>
    %c0_395 = arith.constant 0 : index
    %c1_396 = arith.constant 1 : index
    %c0_397 = arith.constant 0 : index
    %c0_398 = arith.constant 0 : index
    %374 = vector.load %arg5[%c0_395, %c1_396, %c0_397, %c0_398] : memref<1x2x8x32xf32, #tpu.memory_space<vmem>>, vector<1x1x8x32xf32>
    %375 = vector.shape_cast %374 : vector<1x1x8x32xf32> to vector<8x32xf32>
    %c0_399 = arith.constant 0 : index
    %c1_400 = arith.constant 1 : index
    %c0_401 = arith.constant 0 : index
    %c0_402 = arith.constant 0 : index
    %376 = vector.load %arg6[%c0_399, %c1_400, %c0_401, %c0_402] : memref<1x2x8x32xf32, #tpu.memory_space<vmem>>, vector<1x1x8x32xf32>
    %377 = vector.shape_cast %376 : vector<1x1x8x32xf32> to vector<8x32xf32>
    %cst_403 = arith.constant dense<0.000000e+00> : vector<8x32xf32>
    %378 = tpu.matmul %371, %369, %cst_403 {dimension_numbers = #tpu.dot_dimension_numbers<[1], [0], [0], [1], [0, 0, 1, 1], [], []>} : vector<8x8xbf16>, vector<8x32xbf16>, vector<8x32xf32> -> vector<8x32xf32>
    %379 = arith.addf %378, %375 : vector<8x32xf32>
    %cst_404 = arith.constant dense<0xFF800000> : vector<32xf32>
    %380 = vector.multi_reduction <maximumf>, %379, %cst_404 [0] : vector<8x32xf32> to vector<32xf32>
    %381 = vector.shape_cast %380 : vector<32xf32> to vector<1x32xf32>
    %382 = vector.broadcast %381 : vector<1x32xf32> to vector<8x32xf32>
    %383 = arith.subf %379, %382 : vector<8x32xf32>
    %384 = math.exp %383 : vector<8x32xf32>
    %cst_405 = arith.constant dense<0.000000e+00> : vector<32xf32>
    %385 = vector.multi_reduction <add>, %384, %cst_405 [0] : vector<8x32xf32> to vector<32xf32>
    %386 = vector.shape_cast %385 : vector<32xf32> to vector<1x32xf32>
    %387 = arith.mulf %384, %377 : vector<8x32xf32>
    %388 = arith.truncf %387 : vector<8x32xf32> to vector<8x32xbf16>
    %cst_406 = arith.constant dense<0.000000e+00> : vector<8x32xf32>
    %389 = tpu.matmul %373, %388, %cst_406 {dimension_numbers = #tpu.dot_dimension_numbers<[1], [0], [0], [1], [0, 0, 1, 1], [], []>} : vector<8x8xbf16>, vector<8x32xbf16>, vector<8x32xf32> -> vector<8x32xf32>
    %cst_407 = arith.constant 1.000000e+00 : f32
    %390 = vector.broadcast %cst_407 : f32 to vector<1x32xf32>
    %391 = arith.divf %390, %386 : vector<1x32xf32>
    %392 = vector.broadcast %391 : vector<1x32xf32> to vector<8x32xf32>
    %393 = arith.mulf %389, %392 : vector<8x32xf32>
    %394 = tpu.concatenate %367, %393 in 0 : vector<8x32xf32>, vector<8x32xf32> -> vector<16x32xf32>
    %395 = arith.truncf %394 : vector<16x32xf32> to vector<16x32xbf16>
    %c0_408 = arith.constant 0 : index
    %c6_409 = arith.constant 6 : index
    %c0_410 = arith.constant 0 : index
    %c0_411 = arith.constant 0 : index
    %396 = vector.load %arg7[%c0_408, %c6_409, %c0_410, %c0_411] : memref<1x8x16x32xbf16, #tpu.memory_space<vmem>>, vector<1x1x16x32xbf16>
    %397 = vector.shape_cast %396 : vector<1x1x16x32xbf16> to vector<16x32xbf16>
    %398 = vector.shape_cast %395 : vector<16x32xbf16> to vector<1x1x16x32xbf16>
    tpu.vector_store %arg7[%c0_408, %c6_409, %c0_410, %c0_411], %398 {strides = array<i32>} : memref<1x8x16x32xbf16, #tpu.memory_space<vmem>>, vector<1x1x16x32xbf16>,
    %c0_412 = arith.constant 0 : index
    %c7 = arith.constant 7 : index
    %c0_413 = arith.constant 0 : index
    %c0_414 = arith.constant 0 : index
    %c0_415 = arith.constant 0 : index
    %399 = vector.load %arg2[%c0_412, %c7, %c0_413, %c0_414, %c0_415] : memref<1x8x2x8x32xbf16, #tpu.memory_space<vmem>>, vector<1x1x1x8x32xbf16>
    %400 = vector.shape_cast %399 : vector<1x1x1x8x32xbf16> to vector<8x32xbf16>
    %c0_416 = arith.constant 0 : index
    %c7_417 = arith.constant 7 : index
    %c0_418 = arith.constant 0 : index
    %c0_419 = arith.constant 0 : index
    %c0_420 = arith.constant 0 : index
    %401 = vector.load %arg3[%c0_416, %c7_417, %c0_418, %c0_419, %c0_420] : memref<1x8x2x8x8xbf16, #tpu.memory_space<vmem>>, vector<1x1x1x8x8xbf16>
    %402 = vector.shape_cast %401 : vector<1x1x1x8x8xbf16> to vector<8x8xbf16>
    %c0_421 = arith.constant 0 : index
    %c7_422 = arith.constant 7 : index
    %c0_423 = arith.constant 0 : index
    %c0_424 = arith.constant 0 : index
    %c0_425 = arith.constant 0 : index
    %403 = vector.load %arg4[%c0_421, %c7_422, %c0_423, %c0_424, %c0_425] : memref<1x8x2x8x8xbf16, #tpu.memory_space<vmem>>, vector<1x1x1x8x8xbf16>
    %404 = vector.shape_cast %403 : vector<1x1x1x8x8xbf16> to vector<8x8xbf16>
    %c0_426 = arith.constant 0 : index
    %c0_427 = arith.constant 0 : index
    %c0_428 = arith.constant 0 : index
    %c0_429 = arith.constant 0 : index
    %405 = vector.load %arg5[%c0_426, %c0_427, %c0_428, %c0_429] : memref<1x2x8x32xf32, #tpu.memory_space<vmem>>, vector<1x1x8x32xf32>
    %406 = vector.shape_cast %405 : vector<1x1x8x32xf32> to vector<8x32xf32>
    %c0_430 = arith.constant 0 : index
    %c0_431 = arith.constant 0 : index
    %c0_432 = arith.constant 0 : index
    %c0_433 = arith.constant 0 : index
    %407 = vector.load %arg6[%c0_430, %c0_431, %c0_432, %c0_433] : memref<1x2x8x32xf32, #tpu.memory_space<vmem>>, vector<1x1x8x32xf32>
    %408 = vector.shape_cast %407 : vector<1x1x8x32xf32> to vector<8x32xf32>
    %cst_434 = arith.constant dense<0.000000e+00> : vector<8x32xf32>
    %409 = tpu.matmul %402, %400, %cst_434 {dimension_numbers = #tpu.dot_dimension_numbers<[1], [0], [0], [1], [0, 0, 1, 1], [], []>} : vector<8x8xbf16>, vector<8x32xbf16>, vector<8x32xf32> -> vector<8x32xf32>
    %410 = arith.addf %409, %406 : vector<8x32xf32>
    %cst_435 = arith.constant dense<0xFF800000> : vector<32xf32>
    %411 = vector.multi_reduction <maximumf>, %410, %cst_435 [0] : vector<8x32xf32> to vector<32xf32>
    %412 = vector.shape_cast %411 : vector<32xf32> to vector<1x32xf32>
    %413 = vector.broadcast %412 : vector<1x32xf32> to vector<8x32xf32>
    %414 = arith.subf %410, %413 : vector<8x32xf32>
    %415 = math.exp %414 : vector<8x32xf32>
    %cst_436 = arith.constant dense<0.000000e+00> : vector<32xf32>
    %416 = vector.multi_reduction <add>, %415, %cst_436 [0] : vector<8x32xf32> to vector<32xf32>
    %417 = vector.shape_cast %416 : vector<32xf32> to vector<1x32xf32>
    %418 = arith.mulf %415, %408 : vector<8x32xf32>
    %419 = arith.truncf %418 : vector<8x32xf32> to vector<8x32xbf16>
    %cst_437 = arith.constant dense<0.000000e+00> : vector<8x32xf32>
    %420 = tpu.matmul %404, %419, %cst_437 {dimension_numbers = #tpu.dot_dimension_numbers<[1], [0], [0], [1], [0, 0, 1, 1], [], []>} : vector<8x8xbf16>, vector<8x32xbf16>, vector<8x32xf32> -> vector<8x32xf32>
    %cst_438 = arith.constant 1.000000e+00 : f32
    %421 = vector.broadcast %cst_438 : f32 to vector<1x32xf32>
    %422 = arith.divf %421, %417 : vector<1x32xf32>
    %423 = vector.broadcast %422 : vector<1x32xf32> to vector<8x32xf32>
    %424 = arith.mulf %420, %423 : vector<8x32xf32>
    %c0_439 = arith.constant 0 : index
    %c7_440 = arith.constant 7 : index
    %c1_441 = arith.constant 1 : index
    %c0_442 = arith.constant 0 : index
    %c0_443 = arith.constant 0 : index
    %425 = vector.load %arg2[%c0_439, %c7_440, %c1_441, %c0_442, %c0_443] : memref<1x8x2x8x32xbf16, #tpu.memory_space<vmem>>, vector<1x1x1x8x32xbf16>
    %426 = vector.shape_cast %425 : vector<1x1x1x8x32xbf16> to vector<8x32xbf16>
    %c0_444 = arith.constant 0 : index
    %c7_445 = arith.constant 7 : index
    %c1_446 = arith.constant 1 : index
    %c0_447 = arith.constant 0 : index
    %c0_448 = arith.constant 0 : index
    %427 = vector.load %arg3[%c0_444, %c7_445, %c1_446, %c0_447, %c0_448] : memref<1x8x2x8x8xbf16, #tpu.memory_space<vmem>>, vector<1x1x1x8x8xbf16>
    %428 = vector.shape_cast %427 : vector<1x1x1x8x8xbf16> to vector<8x8xbf16>
    %c0_449 = arith.constant 0 : index
    %c7_450 = arith.constant 7 : index
    %c1_451 = arith.constant 1 : index
    %c0_452 = arith.constant 0 : index
    %c0_453 = arith.constant 0 : index
    %429 = vector.load %arg4[%c0_449, %c7_450, %c1_451, %c0_452, %c0_453] : memref<1x8x2x8x8xbf16, #tpu.memory_space<vmem>>, vector<1x1x1x8x8xbf16>
    %430 = vector.shape_cast %429 : vector<1x1x1x8x8xbf16> to vector<8x8xbf16>
    %c0_454 = arith.constant 0 : index
    %c1_455 = arith.constant 1 : index
    %c0_456 = arith.constant 0 : index
    %c0_457 = arith.constant 0 : index
    %431 = vector.load %arg5[%c0_454, %c1_455, %c0_456, %c0_457] : memref<1x2x8x32xf32, #tpu.memory_space<vmem>>, vector<1x1x8x32xf32>
    %432 = vector.shape_cast %431 : vector<1x1x8x32xf32> to vector<8x32xf32>
    %c0_458 = arith.constant 0 : index
    %c1_459 = arith.constant 1 : index
    %c0_460 = arith.constant 0 : index
    %c0_461 = arith.constant 0 : index
    %433 = vector.load %arg6[%c0_458, %c1_459, %c0_460, %c0_461] : memref<1x2x8x32xf32, #tpu.memory_space<vmem>>, vector<1x1x8x32xf32>
    %434 = vector.shape_cast %433 : vector<1x1x8x32xf32> to vector<8x32xf32>
    %cst_462 = arith.constant dense<0.000000e+00> : vector<8x32xf32>
    %435 = tpu.matmul %428, %426, %cst_462 {dimension_numbers = #tpu.dot_dimension_numbers<[1], [0], [0], [1], [0, 0, 1, 1], [], []>} : vector<8x8xbf16>, vector<8x32xbf16>, vector<8x32xf32> -> vector<8x32xf32>
    %436 = arith.addf %435, %432 : vector<8x32xf32>
    %cst_463 = arith.constant dense<0xFF800000> : vector<32xf32>
    %437 = vector.multi_reduction <maximumf>, %436, %cst_463 [0] : vector<8x32xf32> to vector<32xf32>
    %438 = vector.shape_cast %437 : vector<32xf32> to vector<1x32xf32>
    %439 = vector.broadcast %438 : vector<1x32xf32> to vector<8x32xf32>
    %440 = arith.subf %436, %439 : vector<8x32xf32>
    %441 = math.exp %440 : vector<8x32xf32>
    %cst_464 = arith.constant dense<0.000000e+00> : vector<32xf32>
    %442 = vector.multi_reduction <add>, %441, %cst_464 [0] : vector<8x32xf32> to vector<32xf32>
    %443 = vector.shape_cast %442 : vector<32xf32> to vector<1x32xf32>
    %444 = arith.mulf %441, %434 : vector<8x32xf32>
    %445 = arith.truncf %444 : vector<8x32xf32> to vector<8x32xbf16>
    %cst_465 = arith.constant dense<0.000000e+00> : vector<8x32xf32>
    %446 = tpu.matmul %430, %445, %cst_465 {dimension_numbers = #tpu.dot_dimension_numbers<[1], [0], [0], [1], [0, 0, 1, 1], [], []>} : vector<8x8xbf16>, vector<8x32xbf16>, vector<8x32xf32> -> vector<8x32xf32>
    %cst_466 = arith.constant 1.000000e+00 : f32
    %447 = vector.broadcast %cst_466 : f32 to vector<1x32xf32>
    %448 = arith.divf %447, %443 : vector<1x32xf32>
    %449 = vector.broadcast %448 : vector<1x32xf32> to vector<8x32xf32>
    %450 = arith.mulf %446, %449 : vector<8x32xf32>
    %451 = tpu.concatenate %424, %450 in 0 : vector<8x32xf32>, vector<8x32xf32> -> vector<16x32xf32>
    %452 = arith.truncf %451 : vector<16x32xf32> to vector<16x32xbf16>
    %c0_467 = arith.constant 0 : index
    %c7_468 = arith.constant 7 : index
    %c0_469 = arith.constant 0 : index
    %c0_470 = arith.constant 0 : index
    %453 = vector.load %arg7[%c0_467, %c7_468, %c0_469, %c0_470] : memref<1x8x16x32xbf16, #tpu.memory_space<vmem>>, vector<1x1x16x32xbf16>
    %454 = vector.shape_cast %453 : vector<1x1x16x32xbf16> to vector<16x32xbf16>
    %455 = vector.shape_cast %452 : vector<16x32xbf16> to vector<1x1x16x32xbf16>
    tpu.vector_store %arg7[%c0_467, %c7_468, %c0_469, %c0_470], %455 {strides = array<i32>} : memref<1x8x16x32xbf16, #tpu.memory_space<vmem>>, vector<1x1x16x32xbf16>,
    return
  }
  func.func @transform_0(%arg0: i32, %arg1: i32) -> (i32, i32, i32, i32, i32) {
    %c0_i32 = arith.constant 0 : i32
    %c0_i32_0 = arith.constant 0 : i32
    %c0_i32_1 = arith.constant 0 : i32
    %c0_i32_2 = arith.constant 0 : i32
    return %arg0, %arg1, %c0_i32, %c0_i32_0, %c0_i32_1 : i32, i32, i32, i32, i32
  }
  func.func @transform_1(%arg0: i32, %arg1: i32) -> (i32, i32, i32, i32, i32) {
    %c0_i32 = arith.constant 0 : i32
    %c0_i32_0 = arith.constant 0 : i32
    %c0_i32_1 = arith.constant 0 : i32
    %c0_i32_2 = arith.constant 0 : i32
    return %arg0, %arg1, %c0_i32, %c0_i32_0, %c0_i32_1 : i32, i32, i32, i32, i32
  }
  func.func @transform_2(%arg0: i32, %arg1: i32) -> (i32, i32, i32, i32, i32) {
    %c0_i32 = arith.constant 0 : i32
    %c0_i32_0 = arith.constant 0 : i32
    %c0_i32_1 = arith.constant 0 : i32
    %c0_i32_2 = arith.constant 0 : i32
    return %arg0, %arg1, %c0_i32, %c0_i32_0, %c0_i32_1 : i32, i32, i32, i32, i32
  }
  func.func @transform_3(%arg0: i32, %arg1: i32) -> (i32, i32, i32, i32) {
    %c0_i32 = arith.constant 0 : i32
    %c0_i32_0 = arith.constant 0 : i32
    %c0_i32_1 = arith.constant 0 : i32
    %c0_i32_2 = arith.constant 0 : i32
    return %arg0, %c0_i32, %c0_i32_0, %c0_i32_1 : i32, i32, i32, i32
  }
  func.func @transform_4(%arg0: i32, %arg1: i32) -> (i32, i32, i32, i32) {
    %c0_i32 = arith.constant 0 : i32
    %c0_i32_0 = arith.constant 0 : i32
    %c0_i32_1 = arith.constant 0 : i32
    %c0_i32_2 = arith.constant 0 : i32
    return %arg0, %c0_i32, %c0_i32_0, %c0_i32_1 : i32, i32, i32, i32
  }
  func.func @transform_5(%arg0: i32, %arg1: i32) -> (i32, i32, i32, i32) {
    %c0_i32 = arith.constant 0 : i32
    %c0_i32_0 = arith.constant 0 : i32
    %c0_i32_1 = arith.constant 0 : i32
    return %arg0, %arg1, %c0_i32, %c0_i32_0 : i32, i32, i32, i32
  }
}

</mosaic_0001>

<llo_original>
// kernel: triangle_attention_mq.1
$region0: #{triangle_attention_mq.1}
  #allocation0 [shape = 'u32[]', space=smem, size = 0x4, offset = 0x4, fixed_abs, tag = 'smem constant byte address 0x4 - core index']
  #allocation1 [shape = 'u32[72,128]{1,0:T(1,128)}', space=vmem, size = 0x9000, scoped, tag = 'internal scratch']
  %s0 = inlined_call_operand.vmem [shape: bf16[2,8,2,8,32], index: 0, kind: input, shape index: {}]
  %s1 = inlined_call_operand.vmem [shape: bf16[2,8,2,8,8], index: 1, kind: input, shape index: {}]
  %s2 = inlined_call_operand.vmem [shape: bf16[2,8,2,8,8], index: 2, kind: input, shape index: {}]
  %s3 = inlined_call_operand.vmem [shape: f32[2,2,8,32], index: 3, kind: input, shape index: {}]
  %s4 = inlined_call_operand.vmem [shape: f32[2,2,8,32], index: 4, kind: input, shape index: {}]
  %s5 = inlined_call_operand.vmem [shape: bf16[2,8,16,32], index: 5, kind: output, shape index: {}]
  %s6 = sld [smem:[#allocation0]]
  $region53: #{triangle_attention_mq.1} parent=0
    _
  %s8 = ssub.s32 1, %s6
  %s9 = scalar_select 0, %s8, %s6
  loop: start=0, step=1, limit=4
  $region2: #{triangle_attention_mq.1} parent=0 // loop_pre_header
    _
  $region3: #{triangle_attention_mq.1} parent=0 // loop_header
    %s11 = sphi 0, %s15
    %p12 = scmp.ge.s32.totalorder %s11, 4
    %s18 = sphi 0, %s30
    %s19 = sphi 0, %s26
    %s20 = sphi 0, %s18
    %s21 = sphi 0, %s19
    %s22 = sphi 0, %s20
    %s23 = sphi 0, %s21
    %s35 = sphi 0, %s37
    %s38 = sphi 0, %s35
    %s39 = sphi 0, %s38
    %s55 = sphi 0, %s39
    %s63 = sphi 0, %s65
    %s66 = sphi 0, %s63
    %s67 = sphi 0, %s66
    %s83 = sphi 0, %s67
    %s91 = sphi 0, %s93
    %s94 = sphi 0, %s91
    %s95 = sphi 0, %s94
    %s111 = sphi 0, %s95
    %s117 = sphi 0, %s119
    %s120 = sphi 0, %s117
    %s121 = sphi 0, %s120
    %s137 = sphi 0, %s121
    %s143 = sphi 0, %s145
    %s146 = sphi 0, %s143
    %s147 = sphi 0, %s146
    %s163 = sphi 0, %s147
    %s171 = sphi 0, %s173
    %s174 = sphi 0, %s171
    %s175 = sphi 0, %s174
    %s191 = sphi 0, %s175
  $region4: #{triangle_attention_mq.1} parent=0 // loop_header_branch
    %14 = sbr.rel (%p12) target = $region8
  $region5: #{triangle_attention_mq.1} parent=0 // loop_body
    %s16 = ssub.s32 %s11, 1
    %s17 = ssub.s32 %s11, 2
    %s24 = sadd.s32 1, %s19
    %p25 = scmp.ge.s32.totalorder %s24, 1
    %s26 = scalar_select %p25, 0, %s24
    %s27 = sadd.s32 1, %s18
    %s28 = scalar_select %p25, %s27, %s18
    %p29 = scmp.ge.s32.totalorder %s28, 2
    %s30 = scalar_select %p29, 0, %s28
    %s31 = ssub.s32 %s18, %s30
    %s32 = ssub.s32 %s19, %s26
    %s33 = sor.u32 %s31, %s32
    %p34 = scmp.eq.s32.totalorder %s33, 0
    %s36 = sadd.s32 %s35, 1
    %s37 = scalar_select %p34, %s35, %s36
    %p40 = pneg %p34
    %p41 = scmp.eq.s32.totalorder %s11, 1
    %p42 = por %p40, %p41
    %p43 = scmp.ne.s32.totalorder %s35, %s38
    %p44 = scmp.eq.s32.totalorder %s11, 0
    %p45 = por %p43, %p44
    %p46 = scmp.ne.s32.totalorder %s35, %s38
    %p47 = scmp.eq.s32.totalorder %s16, 1
    %p48 = por %p46, %p47
    %p49 = scmp.ne.s32.totalorder %s38, %s39
    %p50 = scmp.eq.s32.totalorder %s16, 0
    %p51 = por %p49, %p50
    %p52 = scmp.ne.s32.totalorder %s38, %s39
    %p53 = scmp.eq.s32.totalorder %s17, 1
    %p54 = por %p52, %p53
    %p56 = scmp.ne.s32.totalorder %s39, %s55
    %p57 = scmp.eq.s32.totalorder %s17, 0
    %p58 = por %p56, %p57
    %s59 = ssub.s32 %s18, %s30
    %s60 = ssub.s32 %s19, %s26
    %s61 = sor.u32 %s59, %s60
    %p62 = scmp.eq.s32.totalorder %s61, 0
    %s64 = sadd.s32 %s63, 1
    %s65 = scalar_select %p62, %s63, %s64
    %p68 = pneg %p62
    %p69 = scmp.eq.s32.totalorder %s11, 1
    %p70 = por %p68, %p69
    %p71 = scmp.ne.s32.totalorder %s63, %s66
    %p72 = scmp.eq.s32.totalorder %s11, 0
    %p73 = por %p71, %p72
    %p74 = scmp.ne.s32.totalorder %s63, %s66
    %p75 = scmp.eq.s32.totalorder %s16, 1
    %p76 = por %p74, %p75
    %p77 = scmp.ne.s32.totalorder %s66, %s67
    %p78 = scmp.eq.s32.totalorder %s16, 0
    %p79 = por %p77, %p78
    %p80 = scmp.ne.s32.totalorder %s66, %s67
    %p81 = scmp.eq.s32.totalorder %s17, 1
    %p82 = por %p80, %p81
    %p84 = scmp.ne.s32.totalorder %s67, %s83
    %p85 = scmp.eq.s32.totalorder %s17, 0
    %p86 = por %p84, %p85
    %s87 = ssub.s32 %s18, %s30
    %s88 = ssub.s32 %s19, %s26
    %s89 = sor.u32 %s87, %s88
    %p90 = scmp.eq.s32.totalorder %s89, 0
    %s92 = sadd.s32 %s91, 1
    %s93 = scalar_select %p90, %s91, %s92
    %p96 = pneg %p90
    %p97 = scmp.eq.s32.totalorder %s11, 1
    %p98 = por %p96, %p97
    %p99 = scmp.ne.s32.totalorder %s91, %s94
    %p100 = scmp.eq.s32.totalorder %s11, 0
    %p101 = por %p99, %p100
    %p102 = scmp.ne.s32.totalorder %s91, %s94
    %p103 = scmp.eq.s32.totalorder %s16, 1
    %p104 = por %p102, %p103
    %p105 = scmp.ne.s32.totalorder %s94, %s95
    %p106 = scmp.eq.s32.totalorder %s16, 0
    %p107 = por %p105, %p106
    %p108 = scmp.ne.s32.totalorder %s94, %s95
    %p109 = scmp.eq.s32.totalorder %s17, 1
    %p110 = por %p108, %p109
    %p112 = scmp.ne.s32.totalorder %s95, %s111
    %p113 = scmp.eq.s32.totalorder %s17, 0
    %p114 = por %p112, %p113
    %s115 = ssub.s32 %s18, %s30
    %p116 = scmp.eq.s32.totalorder %s115, 0
    %s118 = sadd.s32 %s117, 1
    %s119 = scalar_select %p116, %s117, %s118
    %p122 = pneg %p116
    %p123 = scmp.eq.s32.totalorder %s11, 1
    %p124 = por %p122, %p123
    %p125 = scmp.ne.s32.totalorder %s117, %s120
    %p126 = scmp.eq.s32.totalorder %s11, 0
    %p127 = por %p125, %p126
    %p128 = scmp.ne.s32.totalorder %s117, %s120
    %p129 = scmp.eq.s32.totalorder %s16, 1
    %p130 = por %p128, %p129
    %p131 = scmp.ne.s32.totalorder %s120, %s121
    %p132 = scmp.eq.s32.totalorder %s16, 0
    %p133 = por %p131, %p132
    %p134 = scmp.ne.s32.totalorder %s120, %s121
    %p135 = scmp.eq.s32.totalorder %s17, 1
    %p136 = por %p134, %p135
    %p138 = scmp.ne.s32.totalorder %s121, %s137
    %p139 = scmp.eq.s32.totalorder %s17, 0
    %p140 = por %p138, %p139
    %s141 = ssub.s32 %s18, %s30
    %p142 = scmp.eq.s32.totalorder %s141, 0
    %s144 = sadd.s32 %s143, 1
    %s145 = scalar_select %p142, %s143, %s144
    %p148 = pneg %p142
    %p149 = scmp.eq.s32.totalorder %s11, 1
    %p150 = por %p148, %p149
    %p151 = scmp.ne.s32.totalorder %s143, %s146
    %p152 = scmp.eq.s32.totalorder %s11, 0
    %p153 = por %p151, %p152
    %p154 = scmp.ne.s32.totalorder %s143, %s146
    %p155 = scmp.eq.s32.totalorder %s16, 1
    %p156 = por %p154, %p155
    %p157 = scmp.ne.s32.totalorder %s146, %s147
    %p158 = scmp.eq.s32.totalorder %s16, 0
    %p159 = por %p157, %p158
    %p160 = scmp.ne.s32.totalorder %s146, %s147
    %p161 = scmp.eq.s32.totalorder %s17, 1
    %p162 = por %p160, %p161
    %p164 = scmp.ne.s32.totalorder %s147, %s163
    %p165 = scmp.eq.s32.totalorder %s17, 0
    %p166 = por %p164, %p165
    %s167 = ssub.s32 %s18, %s30
    %s168 = ssub.s32 %s19, %s26
    %s169 = sor.u32 %s167, %s168
    %p170 = scmp.eq.s32.totalorder %s169, 0
    %s172 = sadd.s32 %s171, 1
    %s173 = scalar_select %p170, %s171, %s172
    %p176 = pneg %p170
    %p177 = scmp.eq.s32.totalorder %s11, 1
    %p178 = por %p176, %p177
    %p179 = scmp.ne.s32.totalorder %s171, %s174
    %p180 = scmp.eq.s32.totalorder %s11, 0
    %p181 = por %p179, %p180
    %p182 = scmp.ne.s32.totalorder %s171, %s174
    %p183 = scmp.eq.s32.totalorder %s16, 1
    %p184 = por %p182, %p183
    %p185 = scmp.ne.s32.totalorder %s174, %s175
    %p186 = scmp.eq.s32.totalorder %s16, 0
    %p187 = por %p185, %p186
    %p188 = scmp.ne.s32.totalorder %s174, %s175
    %p189 = scmp.eq.s32.totalorder %s17, 1
    %p190 = por %p188, %p189
    %p192 = scmp.ne.s32.totalorder %s175, %s191
    %p193 = scmp.eq.s32.totalorder %s17, 0
    %p194 = por %p192, %p193
    %p195 = scmp.le.s32.totalorder 1, %s11
    %p196 = scmp.lt.s32.totalorder %s11, 3
    %p197 = pnand %p195, %p196
    %p198 = pneg %p197
    // Predicated region
    $region9: #{triangle_attention_mq.1} parent=5 // pred_check
      _
    $region10: #{triangle_attention_mq.1} parent=5 // pred_check_branch
      %200 = sbr.rel (%p197) target = $region12
    $region11: #{triangle_attention_mq.1} parent=5 // pred_region
      %s201 = ssub.s32 %s11, 1
    $region12: #{triangle_attention_mq.1} parent=5 // pred_fallthru
      _
    %p202 = scmp.lt.s32.totalorder %s11, 2
    // Predicated region
    $region13: #{triangle_attention_mq.1} parent=5 // pred_check
      %p203 = pneg %p202
    $region14: #{triangle_attention_mq.1} parent=5 // pred_check_branch
      %205 = sbr.rel (%p203) target = $region16
    $region15: #{triangle_attention_mq.1} parent=5 // pred_region
      // Predicated region
      $region17: #{triangle_attention_mq.1} parent=15 // pred_check
        %p206 = pneg %p45
      $region18: #{triangle_attention_mq.1} parent=15 // pred_check_branch
        %208 = sbr.rel (%p206) target = $region20
      $region19: #{triangle_attention_mq.1} parent=15 // pred_region
        %s209 = smul.u32 8, %s19
        %p210 = scmp.lt.s32.totalorder %s18, 1
        %s211 = scalar_select %p210, %s18, 1
        %p212 = scmp.lt.s32.totalorder %s209, 7
        %s213 = scalar_select %p212, %s209, 7
        %s214 = smul.addr %s213, 2
        %s215 = smul.addr %s211, 16
        %s216 = sadd.s32 %s214, %s215
        %s217 = smul.addr %s216, 4
        %s218 = scalar_lea.vmem %s0, %s217
        %s219 = smul.u32 8, %s19
      $region20: #{triangle_attention_mq.1} parent=15 // pred_fallthru
        _
      // Predicated region
      $region21: #{triangle_attention_mq.1} parent=15 // pred_check
        %p220 = pneg %p73
      $region22: #{triangle_attention_mq.1} parent=15 // pred_check_branch
        %222 = sbr.rel (%p220) target = $region24
      $region23: #{triangle_attention_mq.1} parent=15 // pred_region
        %s223 = smul.u32 8, %s19
        %p224 = scmp.lt.s32.totalorder %s18, 1
        %s225 = scalar_select %p224, %s18, 1
        %p226 = scmp.lt.s32.totalorder %s223, 7
        %s227 = scalar_select %p226, %s223, 7
        %s228 = smul.addr %s227, 2
        %s229 = smul.addr %s225, 16
        %s230 = sadd.s32 %s228, %s229
        %s231 = smul.addr %s230, 4
        %s232 = scalar_lea.vmem %s1, %s231
        %s233 = smul.u32 8, %s19
      $region24: #{triangle_attention_mq.1} parent=15 // pred_fallthru
        _
      // Predicated region
      $region25: #{triangle_attention_mq.1} parent=15 // pred_check
        %p234 = pneg %p101
      $region26: #{triangle_attention_mq.1} parent=15 // pred_check_branch
        %236 = sbr.rel (%p234) target = $region28
      $region27: #{triangle_attention_mq.1} parent=15 // pred_region
        %s237 = smul.u32 8, %s19
        %p238 = scmp.lt.s32.totalorder %s18, 1
        %s239 = scalar_select %p238, %s18, 1
        %p240 = scmp.lt.s32.totalorder %s237, 7
        %s241 = scalar_select %p240, %s237, 7
        %s242 = smul.addr %s241, 2
        %s243 = smul.addr %s239, 16
        %s244 = sadd.s32 %s242, %s243
        %s245 = smul.addr %s244, 4
        %s246 = scalar_lea.vmem %s2, %s245
        %s247 = smul.u32 8, %s19
      $region28: #{triangle_attention_mq.1} parent=15 // pred_fallthru
        _
      // Predicated region
      $region29: #{triangle_attention_mq.1} parent=15 // pred_check
        %p248 = pneg %p127
      $region30: #{triangle_attention_mq.1} parent=15 // pred_check_branch
        %250 = sbr.rel (%p248) target = $region32
      $region31: #{triangle_attention_mq.1} parent=15 // pred_region
        %p251 = scmp.lt.s32.totalorder %s18, 1
        %s252 = scalar_select %p251, %s18, 1
        %s253 = smul.addr %s252, 2
        %s254 = smul.addr %s253, 8
        %s255 = scalar_lea.vmem %s3, %s254
      $region32: #{triangle_attention_mq.1} parent=15 // pred_fallthru
        _
      // Predicated region
      $region33: #{triangle_attention_mq.1} parent=15 // pred_check
        %p256 = pneg %p153
      $region34: #{triangle_attention_mq.1} parent=15 // pred_check_branch
        %258 = sbr.rel (%p256) target = $region36
      $region35: #{triangle_attention_mq.1} parent=15 // pred_region
        %p259 = scmp.lt.s32.totalorder %s18, 1
        %s260 = scalar_select %p259, %s18, 1
        %s261 = smul.addr %s260, 2
        %s262 = smul.addr %s261, 8
        %s263 = scalar_lea.vmem %s4, %s262
      $region36: #{triangle_attention_mq.1} parent=15 // pred_fallthru
        _
    $region16: #{triangle_attention_mq.1} parent=5 // pred_fallthru
      _
    %p264 = scmp.le.s32.totalorder 1, %s11
    %p265 = scmp.lt.s32.totalorder %s11, 3
    %p266 = pnand %p264, %p265
    %p267 = pneg %p266
    // Predicated region
    $region37: #{triangle_attention_mq.1} parent=5 // pred_check
      _
    $region38: #{triangle_attention_mq.1} parent=5 // pred_check_branch
      %269 = sbr.rel (%p266) target = $region40
    $region39: #{triangle_attention_mq.1} parent=5 // pred_region
      %s270 = ssub.s32 %s11, 1
      %s271 = smul.u32 8, %s21
      %p272 = scmp.lt.s32.totalorder %s20, 1
      %s273 = scalar_select %p272, %s20, 1
      %p274 = scmp.lt.s32.totalorder %s271, 7
      %s275 = scalar_select %p274, %s271, 7
      %s276 = smul.addr %s275, 2
      %s277 = smul.addr %s273, 16
      %s278 = sadd.s32 %s276, %s277
      %s279 = smul.addr %s278, 4
      %s280 = scalar_lea.vmem %s0, %s279
      %p281 = pneg %p51
      %p282 = pneg %p48
      %s283 = smul.u32 8, %s21
      %p284 = scmp.lt.s32.totalorder %s20, 1
      %s285 = scalar_select %p284, %s20, 1
      %p286 = scmp.lt.s32.totalorder %s283, 7
      %s287 = scalar_select %p286, %s283, 7
      %s288 = smul.addr %s287, 2
      %s289 = smul.addr %s285, 16
      %s290 = sadd.s32 %s288, %s289
      %s291 = smul.addr %s290, 4
      %s292 = scalar_lea.vmem %s1, %s291
      %p293 = pneg %p79
      %p294 = pneg %p76
      %s295 = smul.u32 8, %s21
      %p296 = scmp.lt.s32.totalorder %s20, 1
      %s297 = scalar_select %p296, %s20, 1
      %p298 = scmp.lt.s32.totalorder %s295, 7
      %s299 = scalar_select %p298, %s295, 7
      %s300 = smul.addr %s299, 2
      %s301 = smul.addr %s297, 16
      %s302 = sadd.s32 %s300, %s301
      %s303 = smul.addr %s302, 4
      %s304 = scalar_lea.vmem %s2, %s303
      %p305 = pneg %p107
      %p306 = pneg %p104
      %p307 = scmp.lt.s32.totalorder %s20, 1
      %s308 = scalar_select %p307, %s20, 1
      %s309 = smul.addr %s308, 2
      %s310 = smul.addr %s309, 8
      %s311 = scalar_lea.vmem %s3, %s310
      %p312 = pneg %p133
      %p313 = pneg %p130
      %p314 = scmp.lt.s32.totalorder %s20, 1
      %s315 = scalar_select %p314, %s20, 1
      %s316 = smul.addr %s315, 2
      %s317 = smul.addr %s316, 8
      %s318 = scalar_lea.vmem %s4, %s317
      %p319 = pneg %p159
      %p320 = pneg %p156
      %p321 = pneg %p187
      %p322 = pneg %p184
      %s323 = smul.u32 8, %s21
      %p324 = scmp.lt.s32.totalorder %s20, 1
      %s325 = scalar_select %p324, %s20, 1
      %p326 = scmp.lt.s32.totalorder %s323, 7
      %s327 = scalar_select %p326, %s323, 7
      %s328 = smul.addr %s327, 2
      %s329 = smul.addr %s325, 16
      %s330 = sadd.s32 %s328, %s329
      %s331 = smul.addr %s330, 4
      %s332 = scalar_lea.vmem %s5, %s331
      %s333 = smul.u32 8, %s21
      %p334 = scmp.lt.s32.totalorder %s20, 1
      %s335 = scalar_select %p334, %s20, 1
      %p336 = scmp.lt.s32.totalorder %s333, 7
      %s337 = scalar_select %p336, %s333, 7
      %s338 = smul.addr %s337, 2
      %s339 = smul.addr %s335, 16
      %s340 = sadd.s32 %s338, %s339
      %s341 = smul.addr %s340, 4
      %s342 = scalar_lea.vmem %s0, %s341
      %s343 = smul.u32 8, %s21
      %s344 = smul.u32 8, %s21
      %p345 = scmp.lt.s32.totalorder %s20, 1
      %s346 = scalar_select %p345, %s20, 1
      %p347 = scmp.lt.s32.totalorder %s344, 7
      %s348 = scalar_select %p347, %s344, 7
      %s349 = smul.addr %s348, 2
      %s350 = smul.addr %s346, 16
      %s351 = sadd.s32 %s349, %s350
      %s352 = smul.addr %s351, 4
      %s353 = scalar_lea.vmem %s1, %s352
      %s354 = smul.u32 8, %s21
      %s355 = smul.u32 8, %s21
      %p356 = scmp.lt.s32.totalorder %s20, 1
      %s357 = scalar_select %p356, %s20, 1
      %p358 = scmp.lt.s32.totalorder %s355, 7
      %s359 = scalar_select %p358, %s355, 7
      %s360 = smul.addr %s359, 2
      %s361 = smul.addr %s357, 16
      %s362 = sadd.s32 %s360, %s361
      %s363 = smul.addr %s362, 4
      %s364 = scalar_lea.vmem %s2, %s363
      %s365 = smul.u32 8, %s21
      %p366 = scmp.lt.s32.totalorder %s20, 1
      %s367 = scalar_select %p366, %s20, 1
      %s368 = smul.addr %s367, 2
      %s369 = smul.addr %s368, 8
      %s370 = scalar_lea.vmem %s3, %s369
      %p371 = scmp.lt.s32.totalorder %s20, 1
      %s372 = scalar_select %p371, %s20, 1
      %s373 = smul.addr %s372, 2
      %s374 = smul.addr %s373, 8
      %s375 = scalar_lea.vmem %s4, %s374
      %s376 = smul.u32 8, %s21
      %p377 = scmp.lt.s32.totalorder %s20, 1
      %s378 = scalar_select %p377, %s20, 1
      %p379 = scmp.lt.s32.totalorder %s376, 7
      %s380 = scalar_select %p379, %s376, 7
      %s381 = smul.addr %s380, 2
      %s382 = smul.addr %s378, 16
      %s383 = sadd.s32 %s381, %s382
      %s384 = smul.addr %s383, 4
      %s385 = scalar_lea.vmem %s5, %s384
      %s386 = smul.u32 8, %s21
      %v388 = vld [vmem:[%s342] sm:$0xf]
      %v389 = vld [vmem:[%s353] sm:$0xf]
      %v390 = vld [vmem:[%s364] sm:$0xf]
      %v391 = vld [vmem:[%s370] sm:$0xff]
      %v392 = vld [vmem:[%s375] sm:$0xff]
      %vm393 = vcmask 64512
      %v395 = vsel %vm393, %v389, 0
      %vm397 = vcmask 1043456
      %v399 = vsel %vm397, %v388, 0
      %401 = vmatpush.bf16.msra.mxu0 0
      %402 = vmatpush.bf16.msra.mxu0 0
      %403 = vmatpush.bf16.msra.mxu0 0
      %404 = vmatpush.bf16.msra.mxu0 0
      %405 = vmatpush.bf16.msra.mxu0 0
      %406 = vmatpush.bf16.msra.mxu0 0
      %407 = vmatpush.bf16.msra.mxu0 0
      %408 = vmatpush.bf16.msra.mxu0 %v399
      %409 = vmatmul.bf16.gmra.mxu0 %v395
      %v410 = vpop.f32.mrf.mxu0
      %v411 = vadd.f32 %v391, %v410
      %v412 = vpop.f32.mrf.mxu0
      %413 = vdwg.mxu0
      %vm414 = vcmask 261120
      %v415 = vsel %vm414, %v411, -inf
      %v416 = vrot.slane %v415, 4
      %v417 = vmax.f32 %v415, %v416
      %v418 = vrot.slane %v417, 2
      %v419 = vmax.f32 %v417, %v418
      %v420 = vrot.slane %v419, 1
      %v421 = vmax.f32 %v419, %v420
      %v422 = vsub.f32 %v411, %v421
      %v423 = vmul.f32 %v422, 1.442695
      %v424 = vpow.pop %v423
      %v425 = vsel %vm414, %v424, 0.0
      %v426 = vrot.slane %v425, 4
      %v427 = vadd.f32 %v425, %v426
      %v428 = vrot.slane %v427, 2
      %v429 = vadd.f32 %v427, %v428
      %v430 = vrot.slane %v429, 1
      %v431 = vadd.f32 %v429, %v430
      %v432 = vmul.f32 %v424, %v392
      %v433 = vpack.c.bf16 %v432, %v432
      %v435 = vsel %vm393, %v390, 0
      %v438 = vsel %vm397, %v433, 0
      %440 = vmatpush.bf16.msra.mxu0 0
      %441 = vmatpush.bf16.msra.mxu0 0
      %442 = vmatpush.bf16.msra.mxu0 0
      %443 = vmatpush.bf16.msra.mxu0 0
      %444 = vmatpush.bf16.msra.mxu0 0
      %445 = vmatpush.bf16.msra.mxu0 0
      %446 = vmatpush.bf16.msra.mxu0 0
      %447 = vmatpush.bf16.msra.mxu0 %v438
      %448 = vmatmul.bf16.gmra.mxu0 %v435
      %v449 = vpop.f32.mrf.mxu0
      %v450 = vadd.f32 0.0, %v449
      %v451 = vpop.f32.mrf.mxu0
      %452 = vdwg.mxu0
      %v453 = vrcp.pop %v431
      %v454 = vmul.f32 %v431, %v453
      %v455 = vsub.f32 1.0, %v454
      %v456 = vmul.f32 %v453, %v455
      %v457 = vadd.f32 %v453, %v456
      %vm458 = vweird.f32 %v431
      %vm459 = vweird.f32 %v453
      %vm460 = vmor %vm458, %vm459
      %v461 = vsel %vm460, %v453, %v457
      %v462 = vand.u32 2147483647, %v431
      %vm463 = vcmp.eq.f32.partialorder %v462, 8.507059e+37
      %v464 = vand.u32 %v431, 2147483648
      %v465 = vor.u32 1.1754944e-38, %v464
      %v466 = vsel %vm463, %v465, %v461
      %v467 = vmul.f32 1.0, %v466
      %v468 = vmul.f32 %v450, %v467
      %s469 = scalar_lea.vmem %s342, 4
      %v470 = vld [vmem:[%s469] sm:$0xf]
      %s471 = scalar_lea.vmem %s353, 4
      %v472 = vld [vmem:[%s471] sm:$0xf]
      %s473 = scalar_lea.vmem %s364, 4
      %v474 = vld [vmem:[%s473] sm:$0xf]
      %s475 = scalar_lea.vmem %s370, 8
      %v476 = vld [vmem:[%s475] sm:$0xff]
      %s477 = scalar_lea.vmem %s375, 8
      %v478 = vld [vmem:[%s477] sm:$0xff]
      %v480 = vsel %vm393, %v472, 0
      %v483 = vsel %vm397, %v470, 0
      %485 = vmatpush.bf16.msra.mxu0 0
      %486 = vmatpush.bf16.msra.mxu0 0
      %487 = vmatpush.bf16.msra.mxu0 0
      %488 = vmatpush.bf16.msra.mxu0 0
      %489 = vmatpush.bf16.msra.mxu0 0
      %490 = vmatpush.bf16.msra.mxu0 0
      %491 = vmatpush.bf16.msra.mxu0 0
      %492 = vmatpush.bf16.msra.mxu0 %v483
      %493 = vmatmul.bf16.gmra.mxu0 %v480
      %v494 = vpop.f32.mrf.mxu0
      %v495 = vadd.f32 %v476, %v494
      %v496 = vpop.f32.mrf.mxu0
      %497 = vdwg.mxu0
      %v498 = vsel %vm414, %v495, -inf
      %v499 = vrot.slane %v498, 4
      %v500 = vmax.f32 %v498, %v499
      %v501 = vrot.slane %v500, 2
      %v502 = vmax.f32 %v500, %v501
      %v503 = vrot.slane %v502, 1
      %v504 = vmax.f32 %v502, %v503
      %v505 = vsub.f32 %v495, %v504
      %v506 = vmul.f32 %v505, 1.442695
      %v507 = vpow.pop %v506
      %v508 = vsel %vm414, %v507, 0.0
      %v509 = vrot.slane %v508, 4
      %v510 = vadd.f32 %v508, %v509
      %v511 = vrot.slane %v510, 2
      %v512 = vadd.f32 %v510, %v511
      %v513 = vrot.slane %v512, 1
      %v514 = vadd.f32 %v512, %v513
      %v515 = vmul.f32 %v507, %v478
      %v516 = vpack.c.bf16 %v515, %v515
      %v518 = vsel %vm393, %v474, 0
      %v521 = vsel %vm397, %v516, 0
      %523 = vmatpush.bf16.msra.mxu0 0
      %524 = vmatpush.bf16.msra.mxu0 0
      %525 = vmatpush.bf16.msra.mxu0 0
      %526 = vmatpush.bf16.msra.mxu0 0
      %527 = vmatpush.bf16.msra.mxu0 0
      %528 = vmatpush.bf16.msra.mxu0 0
      %529 = vmatpush.bf16.msra.mxu0 0
      %530 = vmatpush.bf16.msra.mxu0 %v521
      %531 = vmatmul.bf16.gmra.mxu0 %v518
      %v532 = vpop.f32.mrf.mxu0
      %v533 = vadd.f32 0.0, %v532
      %v534 = vpop.f32.mrf.mxu0
      %535 = vdwg.mxu0
      %v536 = vrcp.pop %v514
      %v537 = vmul.f32 %v514, %v536
      %v538 = vsub.f32 1.0, %v537
      %v539 = vmul.f32 %v536, %v538
      %v540 = vadd.f32 %v536, %v539
      %vm541 = vweird.f32 %v514
      %vm542 = vweird.f32 %v536
      %vm543 = vmor %vm541, %vm542
      %v544 = vsel %vm543, %v536, %v540
      %v545 = vand.u32 2147483647, %v514
      %vm546 = vcmp.eq.f32.partialorder %v545, 8.507059e+37
      %v547 = vand.u32 %v514, 2147483648
      %v548 = vor.u32 1.1754944e-38, %v547
      %v549 = vsel %vm546, %v548, %v544
      %v550 = vmul.f32 1.0, %v549
      %v551 = vmul.f32 %v533, %v550
      %v552 = vpack.c.bf16 %v468, %v468
      %v553 = vpack.c.bf16 %v551, %v551
      %vm554 = vcmask 257024
      %555 = vst.msk [vmem:[%s385] sm:$0xf] %vm554, %v552
      %556 = vst.msk [vmem:[%s385 + $0x4] sm:$0xf] %vm554, %v553
      %s557 = scalar_lea.vmem %s342, 8
      %v558 = vld [vmem:[%s557] sm:$0xf]
      %s559 = scalar_lea.vmem %s353, 8
      %v560 = vld [vmem:[%s559] sm:$0xf]
      %s561 = scalar_lea.vmem %s364, 8
      %v562 = vld [vmem:[%s561] sm:$0xf]
      %v563 = vld [vmem:[%s370] sm:$0xff]
      %v564 = vld [vmem:[%s375] sm:$0xff]
      %v566 = vsel %vm393, %v560, 0
      %v569 = vsel %vm397, %v558, 0
      %571 = vmatpush.bf16.msra.mxu0 0
      %572 = vmatpush.bf16.msra.mxu0 0
      %573 = vmatpush.bf16.msra.mxu0 0
      %574 = vmatpush.bf16.msra.mxu0 0
      %575 = vmatpush.bf16.msra.mxu0 0
      %576 = vmatpush.bf16.msra.mxu0 0
      %577 = vmatpush.bf16.msra.mxu0 0
      %578 = vmatpush.bf16.msra.mxu0 %v569
      %579 = vmatmul.bf16.gmra.mxu0 %v566
      %v580 = vpop.f32.mrf.mxu0
      %v581 = vadd.f32 %v563, %v580
      %v582 = vpop.f32.mrf.mxu0
      %583 = vdwg.mxu0
      %v584 = vsel %vm414, %v581, -inf
      %v585 = vrot.slane %v584, 4
      %v586 = vmax.f32 %v584, %v585
      %v587 = vrot.slane %v586, 2
      %v588 = vmax.f32 %v586, %v587
      %v589 = vrot.slane %v588, 1
      %v590 = vmax.f32 %v588, %v589
      %v591 = vsub.f32 %v581, %v590
      %v592 = vmul.f32 %v591, 1.442695
      %v593 = vpow.pop %v592
      %v594 = vsel %vm414, %v593, 0.0
      %v595 = vrot.slane %v594, 4
      %v596 = vadd.f32 %v594, %v595
      %v597 = vrot.slane %v596, 2
      %v598 = vadd.f32 %v596, %v597
      %v599 = vrot.slane %v598, 1
      %v600 = vadd.f32 %v598, %v599
      %v601 = vmul.f32 %v593, %v564
      %v602 = vpack.c.bf16 %v601, %v601
      %v604 = vsel %vm393, %v562, 0
      %v607 = vsel %vm397, %v602, 0
      %609 = vmatpush.bf16.msra.mxu0 0
      %610 = vmatpush.bf16.msra.mxu0 0
      %611 = vmatpush.bf16.msra.mxu0 0
      %612 = vmatpush.bf16.msra.mxu0 0
      %613 = vmatpush.bf16.msra.mxu0 0
      %614 = vmatpush.bf16.msra.mxu0 0
      %615 = vmatpush.bf16.msra.mxu0 0
      %616 = vmatpush.bf16.msra.mxu0 %v607
      %617 = vmatmul.bf16.gmra.mxu0 %v604
      %v618 = vpop.f32.mrf.mxu0
      %v619 = vadd.f32 0.0, %v618
      %v620 = vpop.f32.mrf.mxu0
      %621 = vdwg.mxu0
      %v622 = vrcp.pop %v600
      %v623 = vmul.f32 %v600, %v622
      %v624 = vsub.f32 1.0, %v623
      %v625 = vmul.f32 %v622, %v624
      %v626 = vadd.f32 %v622, %v625
      %vm627 = vweird.f32 %v600
      %vm628 = vweird.f32 %v622
      %vm629 = vmor %vm627, %vm628
      %v630 = vsel %vm629, %v622, %v626
      %v631 = vand.u32 2147483647, %v600
      %vm632 = vcmp.eq.f32.partialorder %v631, 8.507059e+37
      %v633 = vand.u32 %v600, 2147483648
      %v634 = vor.u32 1.1754944e-38, %v633
      %v635 = vsel %vm632, %v634, %v630
      %v636 = vmul.f32 1.0, %v635
      %v637 = vmul.f32 %v619, %v636
      %s638 = scalar_lea.vmem %s342, 12
      %v639 = vld [vmem:[%s638] sm:$0xf]
      %s640 = scalar_lea.vmem %s353, 12
      %v641 = vld [vmem:[%s640] sm:$0xf]
      %s642 = scalar_lea.vmem %s364, 12
      %v643 = vld [vmem:[%s642] sm:$0xf]
      %v644 = vld [vmem:[%s475] sm:$0xff]
      %v645 = vld [vmem:[%s477] sm:$0xff]
      %v647 = vsel %vm393, %v641, 0
      %v650 = vsel %vm397, %v639, 0
      %652 = vmatpush.bf16.msra.mxu0 0
      %653 = vmatpush.bf16.msra.mxu0 0
      %654 = vmatpush.bf16.msra.mxu0 0
      %655 = vmatpush.bf16.msra.mxu0 0
      %656 = vmatpush.bf16.msra.mxu0 0
      %657 = vmatpush.bf16.msra.mxu0 0
      %658 = vmatpush.bf16.msra.mxu0 0
      %659 = vmatpush.bf16.msra.mxu0 %v650
      %660 = vmatmul.bf16.gmra.mxu0 %v647
      %v661 = vpop.f32.mrf.mxu0
      %v662 = vadd.f32 %v644, %v661
      %v663 = vpop.f32.mrf.mxu0
      %664 = vdwg.mxu0
      %v665 = vsel %vm414, %v662, -inf
      %v666 = vrot.slane %v665, 4
      %v667 = vmax.f32 %v665, %v666
      %v668 = vrot.slane %v667, 2
      %v669 = vmax.f32 %v667, %v668
      %v670 = vrot.slane %v669, 1
      %v671 = vmax.f32 %v669, %v670
      %v672 = vsub.f32 %v662, %v671
      %v673 = vmul.f32 %v672, 1.442695
      %v674 = vpow.pop %v673
      %v675 = vsel %vm414, %v674, 0.0
      %v676 = vrot.slane %v675, 4
      %v677 = vadd.f32 %v675, %v676
      %v678 = vrot.slane %v677, 2
      %v679 = vadd.f32 %v677, %v678
      %v680 = vrot.slane %v679, 1
      %v681 = vadd.f32 %v679, %v680
      %v682 = vmul.f32 %v674, %v645
      %v683 = vpack.c.bf16 %v682, %v682
      %v685 = vsel %vm393, %v643, 0
      %v688 = vsel %vm397, %v683, 0
      %690 = vmatpush.bf16.msra.mxu0 0
      %691 = vmatpush.bf16.msra.mxu0 0
      %692 = vmatpush.bf16.msra.mxu0 0
      %693 = vmatpush.bf16.msra.mxu0 0
      %694 = vmatpush.bf16.msra.mxu0 0
      %695 = vmatpush.bf16.msra.mxu0 0
      %696 = vmatpush.bf16.msra.mxu0 0
      %697 = vmatpush.bf16.msra.mxu0 %v688
      %698 = vmatmul.bf16.gmra.mxu0 %v685
      %v699 = vpop.f32.mrf.mxu0
      %v700 = vadd.f32 0.0, %v699
      %v701 = vpop.f32.mrf.mxu0
      %702 = vdwg.mxu0
      %v703 = vrcp.pop %v681
      %v704 = vmul.f32 %v681, %v703
      %v705 = vsub.f32 1.0, %v704
      %v706 = vmul.f32 %v703, %v705
      %v707 = vadd.f32 %v703, %v706
      %vm708 = vweird.f32 %v681
      %vm709 = vweird.f32 %v703
      %vm710 = vmor %vm708, %vm709
      %v711 = vsel %vm710, %v703, %v707
      %v712 = vand.u32 2147483647, %v681
      %vm713 = vcmp.eq.f32.partialorder %v712, 8.507059e+37
      %v714 = vand.u32 %v681, 2147483648
      %v715 = vor.u32 1.1754944e-38, %v714
      %v716 = vsel %vm713, %v715, %v711
      %v717 = vmul.f32 1.0, %v716
      %v718 = vmul.f32 %v700, %v717
      %v719 = vpack.c.bf16 %v637, %v637
      %v720 = vpack.c.bf16 %v718, %v718
      %s721 = scalar_lea.vmem %s385, 8
      %722 = vst.msk [vmem:[%s721] sm:$0xf] %vm554, %v719
      %723 = vst.msk [vmem:[%s721 + $0x4] sm:$0xf] %vm554, %v720
      %s724 = scalar_lea.vmem %s342, 16
      %v725 = vld [vmem:[%s724] sm:$0xf]
      %s726 = scalar_lea.vmem %s353, 16
      %v727 = vld [vmem:[%s726] sm:$0xf]
      %s728 = scalar_lea.vmem %s364, 16
      %v729 = vld [vmem:[%s728] sm:$0xf]
      %v730 = vld [vmem:[%s370] sm:$0xff]
      %v731 = vld [vmem:[%s375] sm:$0xff]
      %v733 = vsel %vm393, %v727, 0
      %v736 = vsel %vm397, %v725, 0
      %738 = vmatpush.bf16.msra.mxu0 0
      %739 = vmatpush.bf16.msra.mxu0 0
      %740 = vmatpush.bf16.msra.mxu0 0
      %741 = vmatpush.bf16.msra.mxu0 0
      %742 = vmatpush.bf16.msra.mxu0 0
      %743 = vmatpush.bf16.msra.mxu0 0
      %744 = vmatpush.bf16.msra.mxu0 0
      %745 = vmatpush.bf16.msra.mxu0 %v736
      %746 = vmatmul.bf16.gmra.mxu0 %v733
      %v747 = vpop.f32.mrf.mxu0
      %v748 = vadd.f32 %v730, %v747
      %v749 = vpop.f32.mrf.mxu0
      %750 = vdwg.mxu0
      %v751 = vsel %vm414, %v748, -inf
      %v752 = vrot.slane %v751, 4
      %v753 = vmax.f32 %v751, %v752
      %v754 = vrot.slane %v753, 2
      %v755 = vmax.f32 %v753, %v754
      %v756 = vrot.slane %v755, 1
      %v757 = vmax.f32 %v755, %v756
      %v758 = vsub.f32 %v748, %v757
      %v759 = vmul.f32 %v758, 1.442695
      %v760 = vpow.pop %v759
      %v761 = vsel %vm414, %v760, 0.0
      %v762 = vrot.slane %v761, 4
      %v763 = vadd.f32 %v761, %v762
      %v764 = vrot.slane %v763, 2
      %v765 = vadd.f32 %v763, %v764
      %v766 = vrot.slane %v765, 1
      %v767 = vadd.f32 %v765, %v766
      %v768 = vmul.f32 %v760, %v731
      %v769 = vpack.c.bf16 %v768, %v768
      %v771 = vsel %vm393, %v729, 0
      %v774 = vsel %vm397, %v769, 0
      %776 = vmatpush.bf16.msra.mxu0 0
      %777 = vmatpush.bf16.msra.mxu0 0
      %778 = vmatpush.bf16.msra.mxu0 0
      %779 = vmatpush.bf16.msra.mxu0 0
      %780 = vmatpush.bf16.msra.mxu0 0
      %781 = vmatpush.bf16.msra.mxu0 0
      %782 = vmatpush.bf16.msra.mxu0 0
      %783 = vmatpush.bf16.msra.mxu0 %v774
      %784 = vmatmul.bf16.gmra.mxu0 %v771
      %v785 = vpop.f32.mrf.mxu0
      %v786 = vadd.f32 0.0, %v785
      %v787 = vpop.f32.mrf.mxu0
      %788 = vdwg.mxu0
      %v789 = vrcp.pop %v767
      %v790 = vmul.f32 %v767, %v789
      %v791 = vsub.f32 1.0, %v790
      %v792 = vmul.f32 %v789, %v791
      %v793 = vadd.f32 %v789, %v792
      %vm794 = vweird.f32 %v767
      %vm795 = vweird.f32 %v789
      %vm796 = vmor %vm794, %vm795
      %v797 = vsel %vm796, %v789, %v793
      %v798 = vand.u32 2147483647, %v767
      %vm799 = vcmp.eq.f32.partialorder %v798, 8.507059e+37
      %v800 = vand.u32 %v767, 2147483648
      %v801 = vor.u32 1.1754944e-38, %v800
      %v802 = vsel %vm799, %v801, %v797
      %v803 = vmul.f32 1.0, %v802
      %v804 = vmul.f32 %v786, %v803
      %s805 = scalar_lea.vmem %s342, 20
      %v806 = vld [vmem:[%s805] sm:$0xf]
      %s807 = scalar_lea.vmem %s353, 20
      %v808 = vld [vmem:[%s807] sm:$0xf]
      %s809 = scalar_lea.vmem %s364, 20
      %v810 = vld [vmem:[%s809] sm:$0xf]
      %v811 = vld [vmem:[%s475] sm:$0xff]
      %v812 = vld [vmem:[%s477] sm:$0xff]
      %v814 = vsel %vm393, %v808, 0
      %v817 = vsel %vm397, %v806, 0
      %819 = vmatpush.bf16.msra.mxu0 0
      %820 = vmatpush.bf16.msra.mxu0 0
      %821 = vmatpush.bf16.msra.mxu0 0
      %822 = vmatpush.bf16.msra.mxu0 0
      %823 = vmatpush.bf16.msra.mxu0 0
      %824 = vmatpush.bf16.msra.mxu0 0
      %825 = vmatpush.bf16.msra.mxu0 0
      %826 = vmatpush.bf16.msra.mxu0 %v817
      %827 = vmatmul.bf16.gmra.mxu0 %v814
      %v828 = vpop.f32.mrf.mxu0
      %v829 = vadd.f32 %v811, %v828
      %v830 = vpop.f32.mrf.mxu0
      %831 = vdwg.mxu0
      %v832 = vsel %vm414, %v829, -inf
      %v833 = vrot.slane %v832, 4
      %v834 = vmax.f32 %v832, %v833
      %v835 = vrot.slane %v834, 2
      %v836 = vmax.f32 %v834, %v835
      %v837 = vrot.slane %v836, 1
      %v838 = vmax.f32 %v836, %v837
      %v839 = vsub.f32 %v829, %v838
      %v840 = vmul.f32 %v839, 1.442695
      %v841 = vpow.pop %v840
      %v842 = vsel %vm414, %v841, 0.0
      %v843 = vrot.slane %v842, 4
      %v844 = vadd.f32 %v842, %v843
      %v845 = vrot.slane %v844, 2
      %v846 = vadd.f32 %v844, %v845
      %v847 = vrot.slane %v846, 1
      %v848 = vadd.f32 %v846, %v847
      %v849 = vmul.f32 %v841, %v812
      %v850 = vpack.c.bf16 %v849, %v849
      %v852 = vsel %vm393, %v810, 0
      %v855 = vsel %vm397, %v850, 0
      %857 = vmatpush.bf16.msra.mxu0 0
      %858 = vmatpush.bf16.msra.mxu0 0
      %859 = vmatpush.bf16.msra.mxu0 0
      %860 = vmatpush.bf16.msra.mxu0 0
      %861 = vmatpush.bf16.msra.mxu0 0
      %862 = vmatpush.bf16.msra.mxu0 0
      %863 = vmatpush.bf16.msra.mxu0 0
      %864 = vmatpush.bf16.msra.mxu0 %v855
      %865 = vmatmul.bf16.gmra.mxu0 %v852
      %v866 = vpop.f32.mrf.mxu0
      %v867 = vadd.f32 0.0, %v866
      %v868 = vpop.f32.mrf.mxu0
      %869 = vdwg.mxu0
      %v870 = vrcp.pop %v848
      %v871 = vmul.f32 %v848, %v870
      %v872 = vsub.f32 1.0, %v871
      %v873 = vmul.f32 %v870, %v872
      %v874 = vadd.f32 %v870, %v873
      %vm875 = vweird.f32 %v848
      %vm876 = vweird.f32 %v870
      %vm877 = vmor %vm875, %vm876
      %v878 = vsel %vm877, %v870, %v874
      %v879 = vand.u32 2147483647, %v848
      %vm880 = vcmp.eq.f32.partialorder %v879, 8.507059e+37
      %v881 = vand.u32 %v848, 2147483648
      %v882 = vor.u32 1.1754944e-38, %v881
      %v883 = vsel %vm880, %v882, %v878
      %v884 = vmul.f32 1.0, %v883
      %v885 = vmul.f32 %v867, %v884
      %v886 = vpack.c.bf16 %v804, %v804
      %v887 = vpack.c.bf16 %v885, %v885
      %s888 = scalar_lea.vmem %s385, 16
      %889 = vst.msk [vmem:[%s888] sm:$0xf] %vm554, %v886
      %890 = vst.msk [vmem:[%s888 + $0x4] sm:$0xf] %vm554, %v887
      %s891 = scalar_lea.vmem %s342, 24
      %v892 = vld [vmem:[%s891] sm:$0xf]
      %s893 = scalar_lea.vmem %s353, 24
      %v894 = vld [vmem:[%s893] sm:$0xf]
      %s895 = scalar_lea.vmem %s364, 24
      %v896 = vld [vmem:[%s895] sm:$0xf]
      %v897 = vld [vmem:[%s370] sm:$0xff]
      %v898 = vld [vmem:[%s375] sm:$0xff]
      %v900 = vsel %vm393, %v894, 0
      %v903 = vsel %vm397, %v892, 0
      %905 = vmatpush.bf16.msra.mxu0 0
      %906 = vmatpush.bf16.msra.mxu0 0
      %907 = vmatpush.bf16.msra.mxu0 0
      %908 = vmatpush.bf16.msra.mxu0 0
      %909 = vmatpush.bf16.msra.mxu0 0
      %910 = vmatpush.bf16.msra.mxu0 0
      %911 = vmatpush.bf16.msra.mxu0 0
      %912 = vmatpush.bf16.msra.mxu0 %v903
      %913 = vmatmul.bf16.gmra.mxu0 %v900
      %v914 = vpop.f32.mrf.mxu0
      %v915 = vadd.f32 %v897, %v914
      %v916 = vpop.f32.mrf.mxu0
      %917 = vdwg.mxu0
      %v918 = vsel %vm414, %v915, -inf
      %v919 = vrot.slane %v918, 4
      %v920 = vmax.f32 %v918, %v919
      %v921 = vrot.slane %v920, 2
      %v922 = vmax.f32 %v920, %v921
      %v923 = vrot.slane %v922, 1
      %v924 = vmax.f32 %v922, %v923
      %v925 = vsub.f32 %v915, %v924
      %v926 = vmul.f32 %v925, 1.442695
      %v927 = vpow.pop %v926
      %v928 = vsel %vm414, %v927, 0.0
      %v929 = vrot.slane %v928, 4
      %v930 = vadd.f32 %v928, %v929
      %v931 = vrot.slane %v930, 2
      %v932 = vadd.f32 %v930, %v931
      %v933 = vrot.slane %v932, 1
      %v934 = vadd.f32 %v932, %v933
      %v935 = vmul.f32 %v927, %v898
      %v936 = vpack.c.bf16 %v935, %v935
      %v938 = vsel %vm393, %v896, 0
      %v941 = vsel %vm397, %v936, 0
      %943 = vmatpush.bf16.msra.mxu0 0
      %944 = vmatpush.bf16.msra.mxu0 0
      %945 = vmatpush.bf16.msra.mxu0 0
      %946 = vmatpush.bf16.msra.mxu0 0
      %947 = vmatpush.bf16.msra.mxu0 0
      %948 = vmatpush.bf16.msra.mxu0 0
      %949 = vmatpush.bf16.msra.mxu0 0
      %950 = vmatpush.bf16.msra.mxu0 %v941
      %951 = vmatmul.bf16.gmra.mxu0 %v938
      %v952 = vpop.f32.mrf.mxu0
      %v953 = vadd.f32 0.0, %v952
      %v954 = vpop.f32.mrf.mxu0
      %955 = vdwg.mxu0
      %v956 = vrcp.pop %v934
      %v957 = vmul.f32 %v934, %v956
      %v958 = vsub.f32 1.0, %v957
      %v959 = vmul.f32 %v956, %v958
      %v960 = vadd.f32 %v956, %v959
      %vm961 = vweird.f32 %v934
      %vm962 = vweird.f32 %v956
      %vm963 = vmor %vm961, %vm962
      %v964 = vsel %vm963, %v956, %v960
      %v965 = vand.u32 2147483647, %v934
      %vm966 = vcmp.eq.f32.partialorder %v965, 8.507059e+37
      %v967 = vand.u32 %v934, 2147483648
      %v968 = vor.u32 1.1754944e-38, %v967
      %v969 = vsel %vm966, %v968, %v964
      %v970 = vmul.f32 1.0, %v969
      %v971 = vmul.f32 %v953, %v970
      %s972 = scalar_lea.vmem %s342, 28
      %v973 = vld [vmem:[%s972] sm:$0xf]
      %s974 = scalar_lea.vmem %s353, 28
      %v975 = vld [vmem:[%s974] sm:$0xf]
      %s976 = scalar_lea.vmem %s364, 28
      %v977 = vld [vmem:[%s976] sm:$0xf]
      %v978 = vld [vmem:[%s475] sm:$0xff]
      %v979 = vld [vmem:[%s477] sm:$0xff]
      %v981 = vsel %vm393, %v975, 0
      %v984 = vsel %vm397, %v973, 0
      %986 = vmatpush.bf16.msra.mxu0 0
      %987 = vmatpush.bf16.msra.mxu0 0
      %988 = vmatpush.bf16.msra.mxu0 0
      %989 = vmatpush.bf16.msra.mxu0 0
      %990 = vmatpush.bf16.msra.mxu0 0
      %991 = vmatpush.bf16.msra.mxu0 0
      %992 = vmatpush.bf16.msra.mxu0 0
      %993 = vmatpush.bf16.msra.mxu0 %v984
      %994 = vmatmul.bf16.gmra.mxu0 %v981
      %v995 = vpop.f32.mrf.mxu0
      %v996 = vadd.f32 %v978, %v995
      %v997 = vpop.f32.mrf.mxu0
      %998 = vdwg.mxu0
      %v999 = vsel %vm414, %v996, -inf
      %v1000 = vrot.slane %v999, 4
      %v1001 = vmax.f32 %v999, %v1000
      %v1002 = vrot.slane %v1001, 2
      %v1003 = vmax.f32 %v1001, %v1002
      %v1004 = vrot.slane %v1003, 1
      %v1005 = vmax.f32 %v1003, %v1004
      %v1006 = vsub.f32 %v996, %v1005
      %v1007 = vmul.f32 %v1006, 1.442695
      %v1008 = vpow.pop %v1007
      %v1009 = vsel %vm414, %v1008, 0.0
      %v1010 = vrot.slane %v1009, 4
      %v1011 = vadd.f32 %v1009, %v1010
      %v1012 = vrot.slane %v1011, 2
      %v1013 = vadd.f32 %v1011, %v1012
      %v1014 = vrot.slane %v1013, 1
      %v1015 = vadd.f32 %v1013, %v1014
      %v1016 = vmul.f32 %v1008, %v979
      %v1017 = vpack.c.bf16 %v1016, %v1016
      %v1019 = vsel %vm393, %v977, 0
      %v1022 = vsel %vm397, %v1017, 0
      %1024 = vmatpush.bf16.msra.mxu0 0
      %1025 = vmatpush.bf16.msra.mxu0 0
      %1026 = vmatpush.bf16.msra.mxu0 0
      %1027 = vmatpush.bf16.msra.mxu0 0
      %1028 = vmatpush.bf16.msra.mxu0 0
      %1029 = vmatpush.bf16.msra.mxu0 0
      %1030 = vmatpush.bf16.msra.mxu0 0
      %1031 = vmatpush.bf16.msra.mxu0 %v1022
      %1032 = vmatmul.bf16.gmra.mxu0 %v1019
      %v1033 = vpop.f32.mrf.mxu0
      %v1034 = vadd.f32 0.0, %v1033
      %v1035 = vpop.f32.mrf.mxu0
      %1036 = vdwg.mxu0
      %v1037 = vrcp.pop %v1015
      %v1038 = vmul.f32 %v1015, %v1037
      %v1039 = vsub.f32 1.0, %v1038
      %v1040 = vmul.f32 %v1037, %v1039
      %v1041 = vadd.f32 %v1037, %v1040
      %vm1042 = vweird.f32 %v1015
      %vm1043 = vweird.f32 %v1037
      %vm1044 = vmor %vm1042, %vm1043
      %v1045 = vsel %vm1044, %v1037, %v1041
      %v1046 = vand.u32 2147483647, %v1015
      %vm1047 = vcmp.eq.f32.partialorder %v1046, 8.507059e+37
      %v1048 = vand.u32 %v1015, 2147483648
      %v1049 = vor.u32 1.1754944e-38, %v1048
      %v1050 = vsel %vm1047, %v1049, %v1045
      %v1051 = vmul.f32 1.0, %v1050
      %v1052 = vmul.f32 %v1034, %v1051
      %v1053 = vpack.c.bf16 %v971, %v971
      %v1054 = vpack.c.bf16 %v1052, %v1052
      %s1055 = scalar_lea.vmem %s385, 24
      %1056 = vst.msk [vmem:[%s1055] sm:$0xf] %vm554, %v1053
      %1057 = vst.msk [vmem:[%s1055 + $0x4] sm:$0xf] %vm554, %v1054
      %s1058 = scalar_lea.vmem %s342, 32
      %v1059 = vld [vmem:[%s1058] sm:$0xf]
      %s1060 = scalar_lea.vmem %s353, 32
      %v1061 = vld [vmem:[%s1060] sm:$0xf]
      %s1062 = scalar_lea.vmem %s364, 32
      %v1063 = vld [vmem:[%s1062] sm:$0xf]
      %v1064 = vld [vmem:[%s370] sm:$0xff]
      %v1065 = vld [vmem:[%s375] sm:$0xff]
      %v1067 = vsel %vm393, %v1061, 0
      %v1070 = vsel %vm397, %v1059, 0
      %1072 = vmatpush.bf16.msra.mxu0 0
      %1073 = vmatpush.bf16.msra.mxu0 0
      %1074 = vmatpush.bf16.msra.mxu0 0
      %1075 = vmatpush.bf16.msra.mxu0 0
      %1076 = vmatpush.bf16.msra.mxu0 0
      %1077 = vmatpush.bf16.msra.mxu0 0
      %1078 = vmatpush.bf16.msra.mxu0 0
      %1079 = vmatpush.bf16.msra.mxu0 %v1070
      %1080 = vmatmul.bf16.gmra.mxu0 %v1067
      %v1081 = vpop.f32.mrf.mxu0
      %v1082 = vadd.f32 %v1064, %v1081
      %v1083 = vpop.f32.mrf.mxu0
      %1084 = vdwg.mxu0
      %v1085 = vsel %vm414, %v1082, -inf
      %v1086 = vrot.slane %v1085, 4
      %v1087 = vmax.f32 %v1085, %v1086
      %v1088 = vrot.slane %v1087, 2
      %v1089 = vmax.f32 %v1087, %v1088
      %v1090 = vrot.slane %v1089, 1
      %v1091 = vmax.f32 %v1089, %v1090
      %v1092 = vsub.f32 %v1082, %v1091
      %v1093 = vmul.f32 %v1092, 1.442695
      %v1094 = vpow.pop %v1093
      %v1095 = vsel %vm414, %v1094, 0.0
      %v1096 = vrot.slane %v1095, 4
      %v1097 = vadd.f32 %v1095, %v1096
      %v1098 = vrot.slane %v1097, 2
      %v1099 = vadd.f32 %v1097, %v1098
      %v1100 = vrot.slane %v1099, 1
      %v1101 = vadd.f32 %v1099, %v1100
      %v1102 = vmul.f32 %v1094, %v1065
      %v1103 = vpack.c.bf16 %v1102, %v1102
      %v1105 = vsel %vm393, %v1063, 0
      %v1108 = vsel %vm397, %v1103, 0
      %1110 = vmatpush.bf16.msra.mxu0 0
      %1111 = vmatpush.bf16.msra.mxu0 0
      %1112 = vmatpush.bf16.msra.mxu0 0
      %1113 = vmatpush.bf16.msra.mxu0 0
      %1114 = vmatpush.bf16.msra.mxu0 0
      %1115 = vmatpush.bf16.msra.mxu0 0
      %1116 = vmatpush.bf16.msra.mxu0 0
      %1117 = vmatpush.bf16.msra.mxu0 %v1108
      %1118 = vmatmul.bf16.gmra.mxu0 %v1105
      %v1119 = vpop.f32.mrf.mxu0
      %v1120 = vadd.f32 0.0, %v1119
      %v1121 = vpop.f32.mrf.mxu0
      %1122 = vdwg.mxu0
      %v1123 = vrcp.pop %v1101
      %v1124 = vmul.f32 %v1101, %v1123
      %v1125 = vsub.f32 1.0, %v1124
      %v1126 = vmul.f32 %v1123, %v1125
      %v1127 = vadd.f32 %v1123, %v1126
      %vm1128 = vweird.f32 %v1101
      %vm1129 = vweird.f32 %v1123
      %vm1130 = vmor %vm1128, %vm1129
      %v1131 = vsel %vm1130, %v1123, %v1127
      %v1132 = vand.u32 2147483647, %v1101
      %vm1133 = vcmp.eq.f32.partialorder %v1132, 8.507059e+37
      %v1134 = vand.u32 %v1101, 2147483648
      %v1135 = vor.u32 1.1754944e-38, %v1134
      %v1136 = vsel %vm1133, %v1135, %v1131
      %v1137 = vmul.f32 1.0, %v1136
      %v1138 = vmul.f32 %v1120, %v1137
      %s1139 = scalar_lea.vmem %s342, 36
      %v1140 = vld [vmem:[%s1139] sm:$0xf]
      %s1141 = scalar_lea.vmem %s353, 36
      %v1142 = vld [vmem:[%s1141] sm:$0xf]
      %s1143 = scalar_lea.vmem %s364, 36
      %v1144 = vld [vmem:[%s1143] sm:$0xf]
      %v1145 = vld [vmem:[%s475] sm:$0xff]
      %v1146 = vld [vmem:[%s477] sm:$0xff]
      %v1148 = vsel %vm393, %v1142, 0
      %v1151 = vsel %vm397, %v1140, 0
      %1153 = vmatpush.bf16.msra.mxu0 0
      %1154 = vmatpush.bf16.msra.mxu0 0
      %1155 = vmatpush.bf16.msra.mxu0 0
      %1156 = vmatpush.bf16.msra.mxu0 0
      %1157 = vmatpush.bf16.msra.mxu0 0
      %1158 = vmatpush.bf16.msra.mxu0 0
      %1159 = vmatpush.bf16.msra.mxu0 0
      %1160 = vmatpush.bf16.msra.mxu0 %v1151
      %1161 = vmatmul.bf16.gmra.mxu0 %v1148
      %v1162 = vpop.f32.mrf.mxu0
      %v1163 = vadd.f32 %v1145, %v1162
      %v1164 = vpop.f32.mrf.mxu0
      %1165 = vdwg.mxu0
      %v1166 = vsel %vm414, %v1163, -inf
      %v1167 = vrot.slane %v1166, 4
      %v1168 = vmax.f32 %v1166, %v1167
      %v1169 = vrot.slane %v1168, 2
      %v1170 = vmax.f32 %v1168, %v1169
      %v1171 = vrot.slane %v1170, 1
      %v1172 = vmax.f32 %v1170, %v1171
      %v1173 = vsub.f32 %v1163, %v1172
      %v1174 = vmul.f32 %v1173, 1.442695
      %v1175 = vpow.pop %v1174
      %v1176 = vsel %vm414, %v1175, 0.0
      %v1177 = vrot.slane %v1176, 4
      %v1178 = vadd.f32 %v1176, %v1177
      %v1179 = vrot.slane %v1178, 2
      %v1180 = vadd.f32 %v1178, %v1179
      %v1181 = vrot.slane %v1180, 1
      %v1182 = vadd.f32 %v1180, %v1181
      %v1183 = vmul.f32 %v1175, %v1146
      %v1184 = vpack.c.bf16 %v1183, %v1183
      %v1186 = vsel %vm393, %v1144, 0
      %v1189 = vsel %vm397, %v1184, 0
      %1191 = vmatpush.bf16.msra.mxu0 0
      %1192 = vmatpush.bf16.msra.mxu0 0
      %1193 = vmatpush.bf16.msra.mxu0 0
      %1194 = vmatpush.bf16.msra.mxu0 0
      %1195 = vmatpush.bf16.msra.mxu0 0
      %1196 = vmatpush.bf16.msra.mxu0 0
      %1197 = vmatpush.bf16.msra.mxu0 0
      %1198 = vmatpush.bf16.msra.mxu0 %v1189
      %1199 = vmatmul.bf16.gmra.mxu0 %v1186
      %v1200 = vpop.f32.mrf.mxu0
      %v1201 = vadd.f32 0.0, %v1200
      %v1202 = vpop.f32.mrf.mxu0
      %1203 = vdwg.mxu0
      %v1204 = vrcp.pop %v1182
      %v1205 = vmul.f32 %v1182, %v1204
      %v1206 = vsub.f32 1.0, %v1205
      %v1207 = vmul.f32 %v1204, %v1206
      %v1208 = vadd.f32 %v1204, %v1207
      %vm1209 = vweird.f32 %v1182
      %vm1210 = vweird.f32 %v1204
      %vm1211 = vmor %vm1209, %vm1210
      %v1212 = vsel %vm1211, %v1204, %v1208
      %v1213 = vand.u32 2147483647, %v1182
      %vm1214 = vcmp.eq.f32.partialorder %v1213, 8.507059e+37
      %v1215 = vand.u32 %v1182, 2147483648
      %v1216 = vor.u32 1.1754944e-38, %v1215
      %v1217 = vsel %vm1214, %v1216, %v1212
      %v1218 = vmul.f32 1.0, %v1217
      %v1219 = vmul.f32 %v1201, %v1218
      %v1220 = vpack.c.bf16 %v1138, %v1138
      %v1221 = vpack.c.bf16 %v1219, %v1219
      %s1222 = scalar_lea.vmem %s385, 32
      %1223 = vst.msk [vmem:[%s1222] sm:$0xf] %vm554, %v1220
      %1224 = vst.msk [vmem:[%s1222 + $0x4] sm:$0xf] %vm554, %v1221
      %s1225 = scalar_lea.vmem %s342, 40
      %v1226 = vld [vmem:[%s1225] sm:$0xf]
      %s1227 = scalar_lea.vmem %s353, 40
      %v1228 = vld [vmem:[%s1227] sm:$0xf]
      %s1229 = scalar_lea.vmem %s364, 40
      %v1230 = vld [vmem:[%s1229] sm:$0xf]
      %v1231 = vld [vmem:[%s370] sm:$0xff]
      %v1232 = vld [vmem:[%s375] sm:$0xff]
      %v1234 = vsel %vm393, %v1228, 0
      %v1237 = vsel %vm397, %v1226, 0
      %1239 = vmatpush.bf16.msra.mxu0 0
      %1240 = vmatpush.bf16.msra.mxu0 0
      %1241 = vmatpush.bf16.msra.mxu0 0
      %1242 = vmatpush.bf16.msra.mxu0 0
      %1243 = vmatpush.bf16.msra.mxu0 0
      %1244 = vmatpush.bf16.msra.mxu0 0
      %1245 = vmatpush.bf16.msra.mxu0 0
      %1246 = vmatpush.bf16.msra.mxu0 %v1237
      %1247 = vmatmul.bf16.gmra.mxu0 %v1234
      %v1248 = vpop.f32.mrf.mxu0
      %v1249 = vadd.f32 %v1231, %v1248
      %v1250 = vpop.f32.mrf.mxu0
      %1251 = vdwg.mxu0
      %v1252 = vsel %vm414, %v1249, -inf
      %v1253 = vrot.slane %v1252, 4
      %v1254 = vmax.f32 %v1252, %v1253
      %v1255 = vrot.slane %v1254, 2
      %v1256 = vmax.f32 %v1254, %v1255
      %v1257 = vrot.slane %v1256, 1
      %v1258 = vmax.f32 %v1256, %v1257
      %v1259 = vsub.f32 %v1249, %v1258
      %v1260 = vmul.f32 %v1259, 1.442695
      %v1261 = vpow.pop %v1260
      %v1262 = vsel %vm414, %v1261, 0.0
      %v1263 = vrot.slane %v1262, 4
      %v1264 = vadd.f32 %v1262, %v1263
      %v1265 = vrot.slane %v1264, 2
      %v1266 = vadd.f32 %v1264, %v1265
      %v1267 = vrot.slane %v1266, 1
      %v1268 = vadd.f32 %v1266, %v1267
      %v1269 = vmul.f32 %v1261, %v1232
      %v1270 = vpack.c.bf16 %v1269, %v1269
      %v1272 = vsel %vm393, %v1230, 0
      %v1275 = vsel %vm397, %v1270, 0
      %1277 = vmatpush.bf16.msra.mxu0 0
      %1278 = vmatpush.bf16.msra.mxu0 0
      %1279 = vmatpush.bf16.msra.mxu0 0
      %1280 = vmatpush.bf16.msra.mxu0 0
      %1281 = vmatpush.bf16.msra.mxu0 0
      %1282 = vmatpush.bf16.msra.mxu0 0
      %1283 = vmatpush.bf16.msra.mxu0 0
      %1284 = vmatpush.bf16.msra.mxu0 %v1275
      %1285 = vmatmul.bf16.gmra.mxu0 %v1272
      %v1286 = vpop.f32.mrf.mxu0
      %v1287 = vadd.f32 0.0, %v1286
      %v1288 = vpop.f32.mrf.mxu0
      %1289 = vdwg.mxu0
      %v1290 = vrcp.pop %v1268
      %v1291 = vmul.f32 %v1268, %v1290
      %v1292 = vsub.f32 1.0, %v1291
      %v1293 = vmul.f32 %v1290, %v1292
      %v1294 = vadd.f32 %v1290, %v1293
      %vm1295 = vweird.f32 %v1268
      %vm1296 = vweird.f32 %v1290
      %vm1297 = vmor %vm1295, %vm1296
      %v1298 = vsel %vm1297, %v1290, %v1294
      %v1299 = vand.u32 2147483647, %v1268
      %vm1300 = vcmp.eq.f32.partialorder %v1299, 8.507059e+37
      %v1301 = vand.u32 %v1268, 2147483648
      %v1302 = vor.u32 1.1754944e-38, %v1301
      %v1303 = vsel %vm1300, %v1302, %v1298
      %v1304 = vmul.f32 1.0, %v1303
      %v1305 = vmul.f32 %v1287, %v1304
      %s1306 = scalar_lea.vmem %s342, 44
      %v1307 = vld [vmem:[%s1306] sm:$0xf]
      %s1308 = scalar_lea.vmem %s353, 44
      %v1309 = vld [vmem:[%s1308] sm:$0xf]
      %s1310 = scalar_lea.vmem %s364, 44
      %v1311 = vld [vmem:[%s1310] sm:$0xf]
      %v1312 = vld [vmem:[%s475] sm:$0xff]
      %v1313 = vld [vmem:[%s477] sm:$0xff]
      %v1315 = vsel %vm393, %v1309, 0
      %v1318 = vsel %vm397, %v1307, 0
      %1320 = vmatpush.bf16.msra.mxu0 0
      %1321 = vmatpush.bf16.msra.mxu0 0
      %1322 = vmatpush.bf16.msra.mxu0 0
      %1323 = vmatpush.bf16.msra.mxu0 0
      %1324 = vmatpush.bf16.msra.mxu0 0
      %1325 = vmatpush.bf16.msra.mxu0 0
      %1326 = vmatpush.bf16.msra.mxu0 0
      %1327 = vmatpush.bf16.msra.mxu0 %v1318
      %1328 = vmatmul.bf16.gmra.mxu0 %v1315
      %v1329 = vpop.f32.mrf.mxu0
      %v1330 = vadd.f32 %v1312, %v1329
      %v1331 = vpop.f32.mrf.mxu0
      %1332 = vdwg.mxu0
      %v1333 = vsel %vm414, %v1330, -inf
      %v1334 = vrot.slane %v1333, 4
      %v1335 = vmax.f32 %v1333, %v1334
      %v1336 = vrot.slane %v1335, 2
      %v1337 = vmax.f32 %v1335, %v1336
      %v1338 = vrot.slane %v1337, 1
      %v1339 = vmax.f32 %v1337, %v1338
      %v1340 = vsub.f32 %v1330, %v1339
      %v1341 = vmul.f32 %v1340, 1.442695
      %v1342 = vpow.pop %v1341
      %v1343 = vsel %vm414, %v1342, 0.0
      %v1344 = vrot.slane %v1343, 4
      %v1345 = vadd.f32 %v1343, %v1344
      %v1346 = vrot.slane %v1345, 2
      %v1347 = vadd.f32 %v1345, %v1346
      %v1348 = vrot.slane %v1347, 1
      %v1349 = vadd.f32 %v1347, %v1348
      %v1350 = vmul.f32 %v1342, %v1313
      %v1351 = vpack.c.bf16 %v1350, %v1350
      %v1353 = vsel %vm393, %v1311, 0
      %v1356 = vsel %vm397, %v1351, 0
      %1358 = vmatpush.bf16.msra.mxu0 0
      %1359 = vmatpush.bf16.msra.mxu0 0
      %1360 = vmatpush.bf16.msra.mxu0 0
      %1361 = vmatpush.bf16.msra.mxu0 0
      %1362 = vmatpush.bf16.msra.mxu0 0
      %1363 = vmatpush.bf16.msra.mxu0 0
      %1364 = vmatpush.bf16.msra.mxu0 0
      %1365 = vmatpush.bf16.msra.mxu0 %v1356
      %1366 = vmatmul.bf16.gmra.mxu0 %v1353
      %v1367 = vpop.f32.mrf.mxu0
      %v1368 = vadd.f32 0.0, %v1367
      %v1369 = vpop.f32.mrf.mxu0
      %1370 = vdwg.mxu0
      %v1371 = vrcp.pop %v1349
      %v1372 = vmul.f32 %v1349, %v1371
      %v1373 = vsub.f32 1.0, %v1372
      %v1374 = vmul.f32 %v1371, %v1373
      %v1375 = vadd.f32 %v1371, %v1374
      %vm1376 = vweird.f32 %v1349
      %vm1377 = vweird.f32 %v1371
      %vm1378 = vmor %vm1376, %vm1377
      %v1379 = vsel %vm1378, %v1371, %v1375
      %v1380 = vand.u32 2147483647, %v1349
      %vm1381 = vcmp.eq.f32.partialorder %v1380, 8.507059e+37
      %v1382 = vand.u32 %v1349, 2147483648
      %v1383 = vor.u32 1.1754944e-38, %v1382
      %v1384 = vsel %vm1381, %v1383, %v1379
      %v1385 = vmul.f32 1.0, %v1384
      %v1386 = vmul.f32 %v1368, %v1385
      %v1387 = vpack.c.bf16 %v1305, %v1305
      %v1388 = vpack.c.bf16 %v1386, %v1386
      %s1389 = scalar_lea.vmem %s385, 40
      %1390 = vst.msk [vmem:[%s1389] sm:$0xf] %vm554, %v1387
      %1391 = vst.msk [vmem:[%s1389 + $0x4] sm:$0xf] %vm554, %v1388
      %s1392 = scalar_lea.vmem %s342, 48
      %v1393 = vld [vmem:[%s1392] sm:$0xf]
      %s1394 = scalar_lea.vmem %s353, 48
      %v1395 = vld [vmem:[%s1394] sm:$0xf]
      %s1396 = scalar_lea.vmem %s364, 48
      %v1397 = vld [vmem:[%s1396] sm:$0xf]
      %v1398 = vld [vmem:[%s370] sm:$0xff]
      %v1399 = vld [vmem:[%s375] sm:$0xff]
      %v1401 = vsel %vm393, %v1395, 0
      %v1404 = vsel %vm397, %v1393, 0
      %1406 = vmatpush.bf16.msra.mxu0 0
      %1407 = vmatpush.bf16.msra.mxu0 0
      %1408 = vmatpush.bf16.msra.mxu0 0
      %1409 = vmatpush.bf16.msra.mxu0 0
      %1410 = vmatpush.bf16.msra.mxu0 0
      %1411 = vmatpush.bf16.msra.mxu0 0
      %1412 = vmatpush.bf16.msra.mxu0 0
      %1413 = vmatpush.bf16.msra.mxu0 %v1404
      %1414 = vmatmul.bf16.gmra.mxu0 %v1401
      %v1415 = vpop.f32.mrf.mxu0
      %v1416 = vadd.f32 %v1398, %v1415
      %v1417 = vpop.f32.mrf.mxu0
      %1418 = vdwg.mxu0
      %v1419 = vsel %vm414, %v1416, -inf
      %v1420 = vrot.slane %v1419, 4
      %v1421 = vmax.f32 %v1419, %v1420
      %v1422 = vrot.slane %v1421, 2
      %v1423 = vmax.f32 %v1421, %v1422
      %v1424 = vrot.slane %v1423, 1
      %v1425 = vmax.f32 %v1423, %v1424
      %v1426 = vsub.f32 %v1416, %v1425
      %v1427 = vmul.f32 %v1426, 1.442695
      %v1428 = vpow.pop %v1427
      %v1429 = vsel %vm414, %v1428, 0.0
      %v1430 = vrot.slane %v1429, 4
      %v1431 = vadd.f32 %v1429, %v1430
      %v1432 = vrot.slane %v1431, 2
      %v1433 = vadd.f32 %v1431, %v1432
      %v1434 = vrot.slane %v1433, 1
      %v1435 = vadd.f32 %v1433, %v1434
      %v1436 = vmul.f32 %v1428, %v1399
      %v1437 = vpack.c.bf16 %v1436, %v1436
      %v1439 = vsel %vm393, %v1397, 0
      %v1442 = vsel %vm397, %v1437, 0
      %1444 = vmatpush.bf16.msra.mxu0 0
      %1445 = vmatpush.bf16.msra.mxu0 0
      %1446 = vmatpush.bf16.msra.mxu0 0
      %1447 = vmatpush.bf16.msra.mxu0 0
      %1448 = vmatpush.bf16.msra.mxu0 0
      %1449 = vmatpush.bf16.msra.mxu0 0
      %1450 = vmatpush.bf16.msra.mxu0 0
      %1451 = vmatpush.bf16.msra.mxu0 %v1442
      %1452 = vmatmul.bf16.gmra.mxu0 %v1439
      %v1453 = vpop.f32.mrf.mxu0
      %v1454 = vadd.f32 0.0, %v1453
      %v1455 = vpop.f32.mrf.mxu0
      %1456 = vdwg.mxu0
      %v1457 = vrcp.pop %v1435
      %v1458 = vmul.f32 %v1435, %v1457
      %v1459 = vsub.f32 1.0, %v1458
      %v1460 = vmul.f32 %v1457, %v1459
      %v1461 = vadd.f32 %v1457, %v1460
      %vm1462 = vweird.f32 %v1435
      %vm1463 = vweird.f32 %v1457
      %vm1464 = vmor %vm1462, %vm1463
      %v1465 = vsel %vm1464, %v1457, %v1461
      %v1466 = vand.u32 2147483647, %v1435
      %vm1467 = vcmp.eq.f32.partialorder %v1466, 8.507059e+37
      %v1468 = vand.u32 %v1435, 2147483648
      %v1469 = vor.u32 1.1754944e-38, %v1468
      %v1470 = vsel %vm1467, %v1469, %v1465
      %v1471 = vmul.f32 1.0, %v1470
      %v1472 = vmul.f32 %v1454, %v1471
      %s1473 = scalar_lea.vmem %s342, 52
      %v1474 = vld [vmem:[%s1473] sm:$0xf]
      %s1475 = scalar_lea.vmem %s353, 52
      %v1476 = vld [vmem:[%s1475] sm:$0xf]
      %s1477 = scalar_lea.vmem %s364, 52
      %v1478 = vld [vmem:[%s1477] sm:$0xf]
      %v1479 = vld [vmem:[%s475] sm:$0xff]
      %v1480 = vld [vmem:[%s477] sm:$0xff]
      %v1482 = vsel %vm393, %v1476, 0
      %v1485 = vsel %vm397, %v1474, 0
      %1487 = vmatpush.bf16.msra.mxu0 0
      %1488 = vmatpush.bf16.msra.mxu0 0
      %1489 = vmatpush.bf16.msra.mxu0 0
      %1490 = vmatpush.bf16.msra.mxu0 0
      %1491 = vmatpush.bf16.msra.mxu0 0
      %1492 = vmatpush.bf16.msra.mxu0 0
      %1493 = vmatpush.bf16.msra.mxu0 0
      %1494 = vmatpush.bf16.msra.mxu0 %v1485
      %1495 = vmatmul.bf16.gmra.mxu0 %v1482
      %v1496 = vpop.f32.mrf.mxu0
      %v1497 = vadd.f32 %v1479, %v1496
      %v1498 = vpop.f32.mrf.mxu0
      %1499 = vdwg.mxu0
      %v1500 = vsel %vm414, %v1497, -inf
      %v1501 = vrot.slane %v1500, 4
      %v1502 = vmax.f32 %v1500, %v1501
      %v1503 = vrot.slane %v1502, 2
      %v1504 = vmax.f32 %v1502, %v1503
      %v1505 = vrot.slane %v1504, 1
      %v1506 = vmax.f32 %v1504, %v1505
      %v1507 = vsub.f32 %v1497, %v1506
      %v1508 = vmul.f32 %v1507, 1.442695
      %v1509 = vpow.pop %v1508
      %v1510 = vsel %vm414, %v1509, 0.0
      %v1511 = vrot.slane %v1510, 4
      %v1512 = vadd.f32 %v1510, %v1511
      %v1513 = vrot.slane %v1512, 2
      %v1514 = vadd.f32 %v1512, %v1513
      %v1515 = vrot.slane %v1514, 1
      %v1516 = vadd.f32 %v1514, %v1515
      %v1517 = vmul.f32 %v1509, %v1480
      %v1518 = vpack.c.bf16 %v1517, %v1517
      %v1520 = vsel %vm393, %v1478, 0
      %v1523 = vsel %vm397, %v1518, 0
      %1525 = vmatpush.bf16.msra.mxu0 0
      %1526 = vmatpush.bf16.msra.mxu0 0
      %1527 = vmatpush.bf16.msra.mxu0 0
      %1528 = vmatpush.bf16.msra.mxu0 0
      %1529 = vmatpush.bf16.msra.mxu0 0
      %1530 = vmatpush.bf16.msra.mxu0 0
      %1531 = vmatpush.bf16.msra.mxu0 0
      %1532 = vmatpush.bf16.msra.mxu0 %v1523
      %1533 = vmatmul.bf16.gmra.mxu0 %v1520
      %v1534 = vpop.f32.mrf.mxu0
      %v1535 = vadd.f32 0.0, %v1534
      %v1536 = vpop.f32.mrf.mxu0
      %1537 = vdwg.mxu0
      %v1538 = vrcp.pop %v1516
      %v1539 = vmul.f32 %v1516, %v1538
      %v1540 = vsub.f32 1.0, %v1539
      %v1541 = vmul.f32 %v1538, %v1540
      %v1542 = vadd.f32 %v1538, %v1541
      %vm1543 = vweird.f32 %v1516
      %vm1544 = vweird.f32 %v1538
      %vm1545 = vmor %vm1543, %vm1544
      %v1546 = vsel %vm1545, %v1538, %v1542
      %v1547 = vand.u32 2147483647, %v1516
      %vm1548 = vcmp.eq.f32.partialorder %v1547, 8.507059e+37
      %v1549 = vand.u32 %v1516, 2147483648
      %v1550 = vor.u32 1.1754944e-38, %v1549
      %v1551 = vsel %vm1548, %v1550, %v1546
      %v1552 = vmul.f32 1.0, %v1551
      %v1553 = vmul.f32 %v1535, %v1552
      %v1554 = vpack.c.bf16 %v1472, %v1472
      %v1555 = vpack.c.bf16 %v1553, %v1553
      %s1556 = scalar_lea.vmem %s385, 48
      %1557 = vst.msk [vmem:[%s1556] sm:$0xf] %vm554, %v1554
      %1558 = vst.msk [vmem:[%s1556 + $0x4] sm:$0xf] %vm554, %v1555
      %s1559 = scalar_lea.vmem %s342, 56
      %v1560 = vld [vmem:[%s1559] sm:$0xf]
      %s1561 = scalar_lea.vmem %s353, 56
      %v1562 = vld [vmem:[%s1561] sm:$0xf]
      %s1563 = scalar_lea.vmem %s364, 56
      %v1564 = vld [vmem:[%s1563] sm:$0xf]
      %v1565 = vld [vmem:[%s370] sm:$0xff]
      %v1566 = vld [vmem:[%s375] sm:$0xff]
      %v1568 = vsel %vm393, %v1562, 0
      %v1571 = vsel %vm397, %v1560, 0
      %1573 = vmatpush.bf16.msra.mxu0 0
      %1574 = vmatpush.bf16.msra.mxu0 0
      %1575 = vmatpush.bf16.msra.mxu0 0
      %1576 = vmatpush.bf16.msra.mxu0 0
      %1577 = vmatpush.bf16.msra.mxu0 0
      %1578 = vmatpush.bf16.msra.mxu0 0
      %1579 = vmatpush.bf16.msra.mxu0 0
      %1580 = vmatpush.bf16.msra.mxu0 %v1571
      %1581 = vmatmul.bf16.gmra.mxu0 %v1568
      %v1582 = vpop.f32.mrf.mxu0
      %v1583 = vadd.f32 %v1565, %v1582
      %v1584 = vpop.f32.mrf.mxu0
      %1585 = vdwg.mxu0
      %v1586 = vsel %vm414, %v1583, -inf
      %v1587 = vrot.slane %v1586, 4
      %v1588 = vmax.f32 %v1586, %v1587
      %v1589 = vrot.slane %v1588, 2
      %v1590 = vmax.f32 %v1588, %v1589
      %v1591 = vrot.slane %v1590, 1
      %v1592 = vmax.f32 %v1590, %v1591
      %v1593 = vsub.f32 %v1583, %v1592
      %v1594 = vmul.f32 %v1593, 1.442695
      %v1595 = vpow.pop %v1594
      %v1596 = vsel %vm414, %v1595, 0.0
      %v1597 = vrot.slane %v1596, 4
      %v1598 = vadd.f32 %v1596, %v1597
      %v1599 = vrot.slane %v1598, 2
      %v1600 = vadd.f32 %v1598, %v1599
      %v1601 = vrot.slane %v1600, 1
      %v1602 = vadd.f32 %v1600, %v1601
      %v1603 = vmul.f32 %v1595, %v1566
      %v1604 = vpack.c.bf16 %v1603, %v1603
      %v1606 = vsel %vm393, %v1564, 0
      %v1609 = vsel %vm397, %v1604, 0
      %1611 = vmatpush.bf16.msra.mxu0 0
      %1612 = vmatpush.bf16.msra.mxu0 0
      %1613 = vmatpush.bf16.msra.mxu0 0
      %1614 = vmatpush.bf16.msra.mxu0 0
      %1615 = vmatpush.bf16.msra.mxu0 0
      %1616 = vmatpush.bf16.msra.mxu0 0
      %1617 = vmatpush.bf16.msra.mxu0 0
      %1618 = vmatpush.bf16.msra.mxu0 %v1609
      %1619 = vmatmul.bf16.gmra.mxu0 %v1606
      %v1620 = vpop.f32.mrf.mxu0
      %v1621 = vadd.f32 0.0, %v1620
      %v1622 = vpop.f32.mrf.mxu0
      %1623 = vdwg.mxu0
      %v1624 = vrcp.pop %v1602
      %v1625 = vmul.f32 %v1602, %v1624
      %v1626 = vsub.f32 1.0, %v1625
      %v1627 = vmul.f32 %v1624, %v1626
      %v1628 = vadd.f32 %v1624, %v1627
      %vm1629 = vweird.f32 %v1602
      %vm1630 = vweird.f32 %v1624
      %vm1631 = vmor %vm1629, %vm1630
      %v1632 = vsel %vm1631, %v1624, %v1628
      %v1633 = vand.u32 2147483647, %v1602
      %vm1634 = vcmp.eq.f32.partialorder %v1633, 8.507059e+37
      %v1635 = vand.u32 %v1602, 2147483648
      %v1636 = vor.u32 1.1754944e-38, %v1635
      %v1637 = vsel %vm1634, %v1636, %v1632
      %v1638 = vmul.f32 1.0, %v1637
      %v1639 = vmul.f32 %v1621, %v1638
      %s1640 = scalar_lea.vmem %s342, 60
      %v1641 = vld [vmem:[%s1640] sm:$0xf]
      %s1642 = scalar_lea.vmem %s353, 60
      %v1643 = vld [vmem:[%s1642] sm:$0xf]
      %s1644 = scalar_lea.vmem %s364, 60
      %v1645 = vld [vmem:[%s1644] sm:$0xf]
      %v1646 = vld [vmem:[%s475] sm:$0xff]
      %v1647 = vld [vmem:[%s477] sm:$0xff]
      %v1649 = vsel %vm393, %v1643, 0
      %v1652 = vsel %vm397, %v1641, 0
      %1654 = vmatpush.bf16.msra.mxu0 0
      %1655 = vmatpush.bf16.msra.mxu0 0
      %1656 = vmatpush.bf16.msra.mxu0 0
      %1657 = vmatpush.bf16.msra.mxu0 0
      %1658 = vmatpush.bf16.msra.mxu0 0
      %1659 = vmatpush.bf16.msra.mxu0 0
      %1660 = vmatpush.bf16.msra.mxu0 0
      %1661 = vmatpush.bf16.msra.mxu0 %v1652
      %1662 = vmatmul.bf16.gmra.mxu0 %v1649
      %v1663 = vpop.f32.mrf.mxu0
      %v1664 = vadd.f32 %v1646, %v1663
      %v1665 = vpop.f32.mrf.mxu0
      %1666 = vdwg.mxu0
      %v1667 = vsel %vm414, %v1664, -inf
      %v1668 = vrot.slane %v1667, 4
      %v1669 = vmax.f32 %v1667, %v1668
      %v1670 = vrot.slane %v1669, 2
      %v1671 = vmax.f32 %v1669, %v1670
      %v1672 = vrot.slane %v1671, 1
      %v1673 = vmax.f32 %v1671, %v1672
      %v1674 = vsub.f32 %v1664, %v1673
      %v1675 = vmul.f32 %v1674, 1.442695
      %v1676 = vpow.pop %v1675
      %v1677 = vsel %vm414, %v1676, 0.0
      %v1678 = vrot.slane %v1677, 4
      %v1679 = vadd.f32 %v1677, %v1678
      %v1680 = vrot.slane %v1679, 2
      %v1681 = vadd.f32 %v1679, %v1680
      %v1682 = vrot.slane %v1681, 1
      %v1683 = vadd.f32 %v1681, %v1682
      %v1684 = vmul.f32 %v1676, %v1647
      %v1685 = vpack.c.bf16 %v1684, %v1684
      %v1687 = vsel %vm393, %v1645, 0
      %v1690 = vsel %vm397, %v1685, 0
      %1692 = vmatpush.bf16.msra.mxu0 0
      %1693 = vmatpush.bf16.msra.mxu0 0
      %1694 = vmatpush.bf16.msra.mxu0 0
      %1695 = vmatpush.bf16.msra.mxu0 0
      %1696 = vmatpush.bf16.msra.mxu0 0
      %1697 = vmatpush.bf16.msra.mxu0 0
      %1698 = vmatpush.bf16.msra.mxu0 0
      %1699 = vmatpush.bf16.msra.mxu0 %v1690
      %1700 = vmatmul.bf16.gmra.mxu0 %v1687
      %v1701 = vpop.f32.mrf.mxu0
      %v1702 = vadd.f32 0.0, %v1701
      %v1703 = vpop.f32.mrf.mxu0
      %1704 = vdwg.mxu0
      %v1705 = vrcp.pop %v1683
      %v1706 = vmul.f32 %v1683, %v1705
      %v1707 = vsub.f32 1.0, %v1706
      %v1708 = vmul.f32 %v1705, %v1707
      %v1709 = vadd.f32 %v1705, %v1708
      %vm1710 = vweird.f32 %v1683
      %vm1711 = vweird.f32 %v1705
      %vm1712 = vmor %vm1710, %vm1711
      %v1713 = vsel %vm1712, %v1705, %v1709
      %v1714 = vand.u32 2147483647, %v1683
      %vm1715 = vcmp.eq.f32.partialorder %v1714, 8.507059e+37
      %v1716 = vand.u32 %v1683, 2147483648
      %v1717 = vor.u32 1.1754944e-38, %v1716
      %v1718 = vsel %vm1715, %v1717, %v1713
      %v1719 = vmul.f32 1.0, %v1718
      %v1720 = vmul.f32 %v1702, %v1719
      %v1721 = vpack.c.bf16 %v1639, %v1639
      %v1722 = vpack.c.bf16 %v1720, %v1720
      %s1723 = scalar_lea.vmem %s385, 56
      %1724 = vst.msk [vmem:[%s1723] sm:$0xf] %vm554, %v1721
      %1725 = vst.msk [vmem:[%s1723 + $0x4] sm:$0xf] %vm554, %v1722
      %s1726 = smul.u32 8, %s21
      %p1727 = scmp.lt.s32.totalorder %s20, 1
      %s1728 = scalar_select %p1727, %s20, 1
      %p1729 = scmp.lt.s32.totalorder %s1726, 7
      %s1730 = scalar_select %p1729, %s1726, 7
      %s1731 = smul.addr %s1730, 2
      %s1732 = smul.addr %s1728, 16
      %s1733 = sadd.s32 %s1731, %s1732
      %s1734 = smul.addr %s1733, 4
      %s1735 = scalar_lea.vmem %s5, %s1734
      // Predicated region
      $region41: #{triangle_attention_mq.1} parent=39 // pred_check
        %p1736 = pneg %p184
      $region42: #{triangle_attention_mq.1} parent=39 // pred_check_branch
        %1738 = sbr.rel (%p1736) target = $region44
      $region43: #{triangle_attention_mq.1} parent=39 // pred_region
        %s1739 = smul.u32 8, %s21
      $region44: #{triangle_attention_mq.1} parent=39 // pred_fallthru
        _
    $region40: #{triangle_attention_mq.1} parent=5 // pred_fallthru
      _
    %p1740 = scmp.le.s32.totalorder 2, %s11
    // Predicated region
    $region45: #{triangle_attention_mq.1} parent=5 // pred_check
      %p1741 = pneg %p1740
    $region46: #{triangle_attention_mq.1} parent=5 // pred_check_branch
      %1743 = sbr.rel (%p1741) target = $region48
    $region47: #{triangle_attention_mq.1} parent=5 // pred_region
      %s1744 = ssub.s32 %s11, 2
      // Predicated region
      $region49: #{triangle_attention_mq.1} parent=47 // pred_check
        %p1745 = pneg %p190
      $region50: #{triangle_attention_mq.1} parent=47 // pred_check_branch
        %1747 = sbr.rel (%p1745) target = $region52
      $region51: #{triangle_attention_mq.1} parent=47 // pred_region
        %s1748 = smul.u32 8, %s23
        %p1749 = scmp.lt.s32.totalorder %s22, 1
        %s1750 = scalar_select %p1749, %s22, 1
        %p1751 = scmp.lt.s32.totalorder %s1748, 7
        %s1752 = scalar_select %p1751, %s1748, 7
        %s1753 = smul.addr %s1752, 2
        %s1754 = smul.addr %s1750, 16
        %s1755 = sadd.s32 %s1753, %s1754
        %s1756 = smul.addr %s1755, 4
        %s1757 = scalar_lea.vmem %s5, %s1756
      $region52: #{triangle_attention_mq.1} parent=47 // pred_fallthru
        _
    $region48: #{triangle_attention_mq.1} parent=5 // pred_fallthru
      _
  $region6: #{triangle_attention_mq.1} parent=0 // loop_footer
    %s15 = sadd.s32 1, %s11
  $region7: #{triangle_attention_mq.1} parent=0 // loop_footer_branch
    %10 = sbr.rel target = $region3
  $region8: #{triangle_attention_mq.1} parent=0 // loop_exit
    _

</llo_original>
